<compile_context>
chip_gen: v6e
topology: v6e:2x2x1
jax: 0.10.0
libtpu: 0.0.40
codegen_flags: <defaults>
</compile_context>

<pallas_src>
import functools

import jax
import jax.numpy as jnp
from jax.experimental import pallas as pl
from jax.experimental.pallas import tpu as pltpu


def conv_bn_add_kernel(x_ref, w_ref, g_ref, b_ref, r_ref, o_ref,
                       sum_ref, sq_ref, scale_ref, shift_ref,
                       *, eps, inv_count):
    # x_ref:     (1, Cin, S)   subsampled image, S = Ho*Wo in lanes
    # w_ref:     (Cout, Cin)   1x1 conv weight (resident across the grid)
    # g_ref:     (Cout, 1)     BN gamma
    # b_ref:     (Cout, 1)     BN beta
    # r_ref:     (1, Cout, S)  residual x37 (only consumed in phase 1)
    # o_ref:     (1, Cout, S)  output
    # scratch:   per-channel sum / sumsq / folded scale / folded shift
    p = pl.program_id(0)           # phase: 0 = stats, 1 = apply
    n = pl.program_id(1)           # image index
    last_n = pl.num_programs(1) - 1

    @pl.when(jnp.logical_and(p == 0, n == 0))
    def _init():
        sum_ref[...] = jnp.zeros_like(sum_ref)
        sq_ref[...] = jnp.zeros_like(sq_ref)

    @pl.when(p == 0)
    def _stats():
        # (Cout, Cin) @ (Cin, S) -> (Cout, S) on the MXU
        y = jnp.dot(w_ref[...], x_ref[0], preferred_element_type=jnp.float32)
        sum_ref[...] += jnp.sum(y, axis=1, keepdims=True)
        sq_ref[...] += jnp.sum(y * y, axis=1, keepdims=True)

    @pl.when(jnp.logical_and(p == 0, n == last_n))
    def _finalize():
        mean = sum_ref[...] * inv_count
        var = sq_ref[...] * inv_count - mean * mean      # one-pass: E[y^2] - E[y]^2
        inv = jax.lax.rsqrt(var + eps)
        scale = g_ref[...] * inv
        scale_ref[...] = scale
        shift_ref[...] = b_ref[...] - mean * scale       # folded BN affine

    @pl.when(p == 1)
    def _apply():
        y = jnp.dot(w_ref[...], x_ref[0], preferred_element_type=jnp.float32)
        out = y * scale_ref[...] + shift_ref[...] + r_ref[0]
        o_ref[0] = out.astype(o_ref.dtype)


def conv_bn_add(x, w, gamma, beta, resid, *, eps=1e-5):
    """x: (N, Cin, H, W) NCHW; w: (Cout, Cin) from the (Cout, Cin, 1, 1) conv;
    resid: (N, Cout, Ho, Wo).  Returns (N, Cout, Ho, Wo)."""
    N, Cin, H, W = x.shape
    Cout = w.shape[0]

    # 1x1 conv, stride 2 == spatial subsample.  This strided slice is the only
    # out-of-kernel data movement; the reshapes below are contiguous
    # (metadata-only) and there are no transposes anywhere.
    # TODO(synk): fold the stride-2 gather into the kernel via lane-strided ref
    # reads once that lowering is guaranteed on all TPU targets.
    xs = x[:, :, ::2, ::2]
    Ho, Wo = xs.shape[2], xs.shape[3]
    S = Ho * Wo

    x3 = xs.reshape(N, Cin, S)            # contiguous -> free
    r3 = resid.reshape(N, Cout, S)        # contiguous -> free
    g = gamma.reshape(Cout, 1).astype(jnp.float32)
    b = beta.reshape(Cout, 1).astype(jnp.float32)

    inv_count = 1.0 / float(N * S)        # BN stats over all N*Ho*Wo positions

    out3 = pl.pallas_call(
        functools.partial(conv_bn_add_kernel, eps=float(eps), inv_count=inv_count),
        out_shape=jax.ShapeDtypeStruct((N, Cout, S), resid.dtype),
        grid=(2, N),                      # (phase, image); phase outermost
        in_specs=[
            pl.BlockSpec((1, Cin, S), lambda p, n: (n, 0, 0)),       # x (both phases)
            pl.BlockSpec((Cout, Cin), lambda p, n: (0, 0)),          # conv weight (resident)
            pl.BlockSpec((Cout, 1), lambda p, n: (0, 0)),            # gamma (resident)
            pl.BlockSpec((Cout, 1), lambda p, n: (0, 0)),            # beta (resident)
            pl.BlockSpec((1, Cout, S), lambda p, n: (p * n, 0, 0)),  # residual (phase 1 only)
        ],
        out_specs=pl.BlockSpec((1, Cout, S), lambda p, n: (p * n, 0, 0)),
        scratch_shapes=[
            pltpu.VMEM((Cout, 1), jnp.float32),   # per-channel sum
            pltpu.VMEM((Cout, 1), jnp.float32),   # per-channel sum of squares
            pltpu.VMEM((Cout, 1), jnp.float32),   # folded scale = gamma * rsqrt(var+eps)
            pltpu.VMEM((Cout, 1), jnp.float32),   # folded shift = beta - mean*scale
        ],
        compiler_params=pltpu.CompilerParams(
            dimension_semantics=("arbitrary", "arbitrary")),
    )(x3, w, g, b, r3)

    return out3.reshape(N, Cout, Ho, Wo)


def reference(x, w, gamma, beta, resid, *, eps=1e-5):
    xs = x[:, :, ::2, ::2].astype(jnp.float32)
    y = jnp.einsum("nchw,oc->nohw", xs, w.astype(jnp.float32))
    mean = jnp.mean(y, axis=(0, 2, 3), keepdims=True)
    var = jnp.mean((y - mean) ** 2, axis=(0, 2, 3), keepdims=True)
    yn = (y - mean) * jax.lax.rsqrt(var + eps)
    yn = yn * gamma.reshape(1, -1, 1, 1) + beta.reshape(1, -1, 1, 1)
    return yn + resid.astype(jnp.float32)


if __name__ == "__main__":
    # Small shapes consistent with the module: channels fixed by the conv
    # (64 -> 144), spatial shrunk 16 -> 8, batch = 2.
    N, Cin, Cout, H, W = 2, 64, 144, 16, 16
    Ho, Wo = H // 2, W // 2

    key = jax.random.PRNGKey(0)
    k_x, k_r, k_w, k_g, k_b = jax.random.split(key, 5)

    x21 = jax.random.normal(k_x, (N, Cin, H, W), dtype=jnp.float32)
    x37 = jax.random.normal(k_r, (N, Cout, Ho, Wo), dtype=jnp.float32)

    # Deterministic parameter init (synthetic, not a checkpoint load).
    w = jax.random.normal(k_w, (Cout, Cin), dtype=jnp.float32) * 0.05   # Conv2d weight (1x1)
    gamma = 1.0 + 0.01 * jax.random.normal(k_g, (Cout,), dtype=jnp.float32)
    beta = 0.01 * jax.random.normal(k_b, (Cout,), dtype=jnp.float32)

    out = conv_bn_add(x21, w, gamma, beta, x37)
    out = jax.block_until_ready(out)

    ref = reference(x21, w, gamma, beta, x37)
    assert out.shape == (N, Cout, Ho, Wo)
    assert jnp.allclose(out, ref, atol=5e-4, rtol=5e-4), float(jnp.max(jnp.abs(out - ref)))

    print("KERNEL_OK")
</pallas_src>

<mosaic_0001>
module attributes {stable_mosaic.version = 11 : i64} {
  func.func @conv_bn_add_kernel(%arg0: i32, %arg1: i32, %arg2: memref<1x64x64xf32, #tpu.memory_space<vmem>>, %arg3: memref<144x64xf32, #tpu.memory_space<vmem>>, %arg4: memref<144x1xf32, #tpu.memory_space<vmem>>, %arg5: memref<144x1xf32, #tpu.memory_space<vmem>>, %arg6: memref<1x144x64xf32, #tpu.memory_space<vmem>>, %arg7: memref<1x144x64xf32, #tpu.memory_space<vmem>>, %arg8: memref<144x1xf32, #tpu.memory_space<vmem>>, %arg9: memref<144x1xf32, #tpu.memory_space<vmem>>, %arg10: memref<144x1xf32, #tpu.memory_space<vmem>>, %arg11: memref<144x1xf32, #tpu.memory_space<vmem>>) attributes {dimension_semantics = [#tpu.dimension_semantics<arbitrary>, #tpu.dimension_semantics<arbitrary>], iteration_bounds = array<i64: 2, 2>, scalar_prefetch = 0 : i64, scratch_operands = 4 : i64, tpu.core_type = #tpu.core_type<tc>, window_params = [{transform_indices = @transform_0, window_bounds = array<i64: 1, 64, 64>}, {pipeline_mode = #tpu.pipeline_mode<synchronous>, transform_indices = @transform_1, window_bounds = array<i64: 144, 64>}, {pipeline_mode = #tpu.pipeline_mode<synchronous>, transform_indices = @transform_2, window_bounds = array<i64: 144, 1>}, {pipeline_mode = #tpu.pipeline_mode<synchronous>, transform_indices = @transform_3, window_bounds = array<i64: 144, 1>}, {transform_indices = @transform_4, window_bounds = array<i64: 1, 144, 64>}, {transform_indices = @transform_5, window_bounds = array<i64: 1, 144, 64>}]} {
    %c0_i32 = arith.constant 0 : i32
    %0 = arith.cmpi eq, %arg0, %c0_i32 : i32
    %c0_i32_0 = arith.constant 0 : i32
    %1 = arith.cmpi eq, %arg1, %c0_i32_0 : i32
    %2 = arith.andi %0, %1 : i1
    %3 = arith.extui %2 : i1 to i32
    %c0_i32_1 = arith.constant 0 : i32
    %4 = arith.cmpi ne, %3, %c0_i32_1 : i32
    scf.if %4 {
      %cst = arith.constant 0.000000e+00 : f32
      %16 = vector.broadcast %cst : f32 to vector<144x1xf32>
      %c0 = arith.constant 0 : index
      %c0_8 = arith.constant 0 : index
      %17 = vector.load %arg8[%c0, %c0_8] : memref<144x1xf32, #tpu.memory_space<vmem>>, vector<144x1xf32>
      tpu.vector_store %arg8[%c0, %c0_8], %16 {strides = array<i32>} : memref<144x1xf32, #tpu.memory_space<vmem>>, vector<144x1xf32>,
      %cst_9 = arith.constant 0.000000e+00 : f32
      %18 = vector.broadcast %cst_9 : f32 to vector<144x1xf32>
      %c0_10 = arith.constant 0 : index
      %c0_11 = arith.constant 0 : index
      %19 = vector.load %arg9[%c0_10, %c0_11] : memref<144x1xf32, #tpu.memory_space<vmem>>, vector<144x1xf32>
      tpu.vector_store %arg9[%c0_10, %c0_11], %18 {strides = array<i32>} : memref<144x1xf32, #tpu.memory_space<vmem>>, vector<144x1xf32>,
    } else {
    }
    %c0_i32_2 = arith.constant 0 : i32
    %5 = arith.cmpi eq, %arg0, %c0_i32_2 : i32
    %6 = arith.extui %5 : i1 to i32
    %c0_i32_3 = arith.constant 0 : i32
    %7 = arith.cmpi ne, %6, %c0_i32_3 : i32
    scf.if %7 {
      %c0 = arith.constant 0 : index
      %c0_8 = arith.constant 0 : index
      %16 = vector.load %arg3[%c0, %c0_8] : memref<144x64xf32, #tpu.memory_space<vmem>>, vector<144x64xf32>
      %c0_9 = arith.constant 0 : index
      %c0_10 = arith.constant 0 : index
      %c0_11 = arith.constant 0 : index
      %17 = vector.load %arg2[%c0_9, %c0_10, %c0_11] : memref<1x64x64xf32, #tpu.memory_space<vmem>>, vector<1x64x64xf32>
      %18 = vector.shape_cast %17 : vector<1x64x64xf32> to vector<64x64xf32>
      %cst = arith.constant dense<0.000000e+00> : vector<144x64xf32>
      %19 = tpu.matmul %16, %18, %cst {dimension_numbers = #tpu.dot_dimension_numbers<[1], [0], [0], [1], [0, 0, 1, 1], [], []>} : vector<144x64xf32>, vector<64x64xf32>, vector<144x64xf32> -> vector<144x64xf32>
      %c0_12 = arith.constant 0 : index
      %c0_13 = arith.constant 0 : index
      %20 = vector.load %arg8[%c0_12, %c0_13] : memref<144x1xf32, #tpu.memory_space<vmem>>, vector<144x1xf32>
      %cst_14 = arith.constant dense<0.000000e+00> : vector<144xf32>
      %21 = vector.multi_reduction <add>, %19, %cst_14 [1] : vector<144x64xf32> to vector<144xf32>
      %22 = vector.shape_cast %21 : vector<144xf32> to vector<144x1xf32>
      %23 = arith.addf %20, %22 : vector<144x1xf32>
      %c0_15 = arith.constant 0 : index
      %c0_16 = arith.constant 0 : index
      %24 = vector.load %arg8[%c0_15, %c0_16] : memref<144x1xf32, #tpu.memory_space<vmem>>, vector<144x1xf32>
      tpu.vector_store %arg8[%c0_15, %c0_16], %23 {strides = array<i32>} : memref<144x1xf32, #tpu.memory_space<vmem>>, vector<144x1xf32>,
      %c0_17 = arith.constant 0 : index
      %c0_18 = arith.constant 0 : index
      %25 = vector.load %arg9[%c0_17, %c0_18] : memref<144x1xf32, #tpu.memory_space<vmem>>, vector<144x1xf32>
      %26 = arith.mulf %19, %19 : vector<144x64xf32>
      %cst_19 = arith.constant dense<0.000000e+00> : vector<144xf32>
      %27 = vector.multi_reduction <add>, %26, %cst_19 [1] : vector<144x64xf32> to vector<144xf32>
      %28 = vector.shape_cast %27 : vector<144xf32> to vector<144x1xf32>
      %29 = arith.addf %25, %28 : vector<144x1xf32>
      %c0_20 = arith.constant 0 : index
      %c0_21 = arith.constant 0 : index
      %30 = vector.load %arg9[%c0_20, %c0_21] : memref<144x1xf32, #tpu.memory_space<vmem>>, vector<144x1xf32>
      tpu.vector_store %arg9[%c0_20, %c0_21], %29 {strides = array<i32>} : memref<144x1xf32, #tpu.memory_space<vmem>>, vector<144x1xf32>,
    } else {
    }
    %c0_i32_4 = arith.constant 0 : i32
    %8 = arith.cmpi eq, %arg0, %c0_i32_4 : i32
    %c1_i32 = arith.constant 1 : i32
    %9 = arith.cmpi eq, %arg1, %c1_i32 : i32
    %10 = arith.andi %8, %9 : i1
    %11 = arith.extui %10 : i1 to i32
    %c0_i32_5 = arith.constant 0 : i32
    %12 = arith.cmpi ne, %11, %c0_i32_5 : i32
    scf.if %12 {
      %c0 = arith.constant 0 : index
      %c0_8 = arith.constant 0 : index
      %16 = vector.load %arg8[%c0, %c0_8] : memref<144x1xf32, #tpu.memory_space<vmem>>, vector<144x1xf32>
      %cst = arith.constant 7.812500e-03 : f32
      %17 = vector.broadcast %cst : f32 to vector<144x1xf32>
      %18 = arith.mulf %16, %17 : vector<144x1xf32>
      %c0_9 = arith.constant 0 : index
      %c0_10 = arith.constant 0 : index
      %19 = vector.load %arg9[%c0_9, %c0_10] : memref<144x1xf32, #tpu.memory_space<vmem>>, vector<144x1xf32>
      %cst_11 = arith.constant 7.812500e-03 : f32
      %20 = vector.broadcast %cst_11 : f32 to vector<144x1xf32>
      %21 = arith.mulf %19, %20 : vector<144x1xf32>
      %22 = arith.mulf %18, %18 : vector<144x1xf32>
      %23 = arith.subf %21, %22 : vector<144x1xf32>
      %cst_12 = arith.constant 9.99999974E-6 : f32
      %24 = vector.broadcast %cst_12 : f32 to vector<144x1xf32>
      %25 = arith.addf %23, %24 : vector<144x1xf32>
      %26 = math.rsqrt %25 : vector<144x1xf32>
      %c0_13 = arith.constant 0 : index
      %c0_14 = arith.constant 0 : index
      %27 = vector.load %arg4[%c0_13, %c0_14] : memref<144x1xf32, #tpu.memory_space<vmem>>, vector<144x1xf32>
      %28 = arith.mulf %27, %26 : vector<144x1xf32>
      %c0_15 = arith.constant 0 : index
      %c0_16 = arith.constant 0 : index
      %29 = vector.load %arg10[%c0_15, %c0_16] : memref<144x1xf32, #tpu.memory_space<vmem>>, vector<144x1xf32>
      tpu.vector_store %arg10[%c0_15, %c0_16], %28 {strides = array<i32>} : memref<144x1xf32, #tpu.memory_space<vmem>>, vector<144x1xf32>,
      %c0_17 = arith.constant 0 : index
      %c0_18 = arith.constant 0 : index
      %30 = vector.load %arg5[%c0_17, %c0_18] : memref<144x1xf32, #tpu.memory_space<vmem>>, vector<144x1xf32>
      %31 = arith.mulf %18, %28 : vector<144x1xf32>
      %32 = arith.subf %30, %31 : vector<144x1xf32>
      %c0_19 = arith.constant 0 : index
      %c0_20 = arith.constant 0 : index
      %33 = vector.load %arg11[%c0_19, %c0_20] : memref<144x1xf32, #tpu.memory_space<vmem>>, vector<144x1xf32>
      tpu.vector_store %arg11[%c0_19, %c0_20], %32 {strides = array<i32>} : memref<144x1xf32, #tpu.memory_space<vmem>>, vector<144x1xf32>,
    } else {
    }
    %c1_i32_6 = arith.constant 1 : i32
    %13 = arith.cmpi eq, %arg0, %c1_i32_6 : i32
    %14 = arith.extui %13 : i1 to i32
    %c0_i32_7 = arith.constant 0 : i32
    %15 = arith.cmpi ne, %14, %c0_i32_7 : i32
    scf.if %15 {
      %c0 = arith.constant 0 : index
      %c0_8 = arith.constant 0 : index
      %16 = vector.load %arg3[%c0, %c0_8] : memref<144x64xf32, #tpu.memory_space<vmem>>, vector<144x64xf32>
      %c0_9 = arith.constant 0 : index
      %c0_10 = arith.constant 0 : index
      %c0_11 = arith.constant 0 : index
      %17 = vector.load %arg2[%c0_9, %c0_10, %c0_11] : memref<1x64x64xf32, #tpu.memory_space<vmem>>, vector<1x64x64xf32>
      %18 = vector.shape_cast %17 : vector<1x64x64xf32> to vector<64x64xf32>
      %cst = arith.constant dense<0.000000e+00> : vector<144x64xf32>
      %19 = tpu.matmul %16, %18, %cst {dimension_numbers = #tpu.dot_dimension_numbers<[1], [0], [0], [1], [0, 0, 1, 1], [], []>} : vector<144x64xf32>, vector<64x64xf32>, vector<144x64xf32> -> vector<144x64xf32>
      %c0_12 = arith.constant 0 : index
      %c0_13 = arith.constant 0 : index
      %20 = vector.load %arg10[%c0_12, %c0_13] : memref<144x1xf32, #tpu.memory_space<vmem>>, vector<144x1xf32>
      %21 = vector.broadcast %20 : vector<144x1xf32> to vector<144x64xf32>
      %22 = arith.mulf %19, %21 : vector<144x64xf32>
      %c0_14 = arith.constant 0 : index
      %c0_15 = arith.constant 0 : index
      %23 = vector.load %arg11[%c0_14, %c0_15] : memref<144x1xf32, #tpu.memory_space<vmem>>, vector<144x1xf32>
      %24 = vector.broadcast %23 : vector<144x1xf32> to vector<144x64xf32>
      %25 = arith.addf %22, %24 : vector<144x64xf32>
      %c0_16 = arith.constant 0 : index
      %c0_17 = arith.constant 0 : index
      %c0_18 = arith.constant 0 : index
      %26 = vector.load %arg6[%c0_16, %c0_17, %c0_18] : memref<1x144x64xf32, #tpu.memory_space<vmem>>, vector<1x144x64xf32>
      %27 = vector.shape_cast %26 : vector<1x144x64xf32> to vector<144x64xf32>
      %28 = arith.addf %25, %27 : vector<144x64xf32>
      %c0_19 = arith.constant 0 : index
      %c0_20 = arith.constant 0 : index
      %c0_21 = arith.constant 0 : index
      %29 = vector.load %arg7[%c0_19, %c0_20, %c0_21] : memref<1x144x64xf32, #tpu.memory_space<vmem>>, vector<1x144x64xf32>
      %30 = vector.shape_cast %29 : vector<1x144x64xf32> to vector<144x64xf32>
      %31 = vector.shape_cast %28 : vector<144x64xf32> to vector<1x144x64xf32>
      tpu.vector_store %arg7[%c0_19, %c0_20, %c0_21], %31 {strides = array<i32>} : memref<1x144x64xf32, #tpu.memory_space<vmem>>, vector<1x144x64xf32>,
    } else {
    }
    return
  }
  func.func @transform_0(%arg0: i32, %arg1: i32) -> (i32, i32, i32) {
    %c0_i32 = arith.constant 0 : i32
    %c0_i32_0 = arith.constant 0 : i32
    %c0_i32_1 = arith.constant 0 : i32
    return %arg1, %c0_i32, %c0_i32_0 : i32, i32, i32
  }
  func.func @transform_1(%arg0: i32, %arg1: i32) -> (i32, i32) {
    %c0_i32 = arith.constant 0 : i32
    %c0_i32_0 = arith.constant 0 : i32
    %c0_i32_1 = arith.constant 0 : i32
    return %c0_i32, %c0_i32_0 : i32, i32
  }
  func.func @transform_2(%arg0: i32, %arg1: i32) -> (i32, i32) {
    %c0_i32 = arith.constant 0 : i32
    %c0_i32_0 = arith.constant 0 : i32
    %c0_i32_1 = arith.constant 0 : i32
    return %c0_i32, %c0_i32_0 : i32, i32
  }
  func.func @transform_3(%arg0: i32, %arg1: i32) -> (i32, i32) {
    %c0_i32 = arith.constant 0 : i32
    %c0_i32_0 = arith.constant 0 : i32
    %c0_i32_1 = arith.constant 0 : i32
    return %c0_i32, %c0_i32_0 : i32, i32
  }
  func.func @transform_4(%arg0: i32, %arg1: i32) -> (i32, i32, i32) {
    %0 = arith.muli %arg0, %arg1 : i32
    %c0_i32 = arith.constant 0 : i32
    %c0_i32_0 = arith.constant 0 : i32
    %c0_i32_1 = arith.constant 0 : i32
    return %0, %c0_i32, %c0_i32_0 : i32, i32, i32
  }
  func.func @transform_5(%arg0: i32, %arg1: i32) -> (i32, i32, i32) {
    %0 = arith.muli %arg0, %arg1 : i32
    %c0_i32 = arith.constant 0 : i32
    %c0_i32_0 = arith.constant 0 : i32
    %c0_i32_1 = arith.constant 0 : i32
    return %0, %c0_i32, %c0_i32_0 : i32, i32, i32
  }
}

</mosaic_0001>

<llo_original>
// kernel: tpu_custom_call.1
$region0: #{tpu_custom_call.1}
  #allocation0 [shape = 'u32[]', space=smem, size = 0x4, offset = 0x4, fixed_abs, tag = 'smem constant byte address 0x4 - core index']
  #allocation1 [shape = 'u32[144,128]{1,0:T(1,128)}', space=vmem, size = 0x12000, scoped, tag = 'internal scratch']
  #allocation2 [shape = 'f32[144,1]{1,0:T(8,128)}', space=vmem, size = 0x12000, scoped, tag = 'scratch operand']
  #allocation3 [shape = 'f32[144,1]{1,0:T(8,128)}', space=vmem, size = 0x12000, scoped, tag = 'scratch operand']
  #allocation4 [shape = 'f32[144,1]{1,0:T(8,128)}', space=vmem, size = 0x12000, scoped, tag = 'scratch operand']
  #allocation5 [shape = 'f32[144,1]{1,0:T(8,128)}', space=vmem, size = 0x12000, scoped, tag = 'scratch operand']
  %s0 = inlined_call_operand.vmem [shape: f32[2,64,64], index: 0, kind: input, shape index: {}]
  %s1 = inlined_call_operand.vmem [shape: f32[144,64], index: 1, kind: input, shape index: {}]
  %s2 = inlined_call_operand.vmem [shape: f32[144,1], index: 2, kind: input, shape index: {}]
  %s3 = inlined_call_operand.vmem [shape: f32[144,1], index: 3, kind: input, shape index: {}]
  %s4 = inlined_call_operand.vmem [shape: f32[2,144,64], index: 4, kind: input, shape index: {}]
  %s5 = inlined_call_operand.vmem [shape: f32[2,144,64], index: 5, kind: output, shape index: {}]
  %s6 = sld [smem:[#allocation0]]
  $region69: #{tpu_custom_call.1} parent=0
    _
  %s8 = ssub.s32 1, %s6
  %s9 = scalar_select 0, %s8, %s6
  loop: start=0, step=1, limit=6
  $region2: #{tpu_custom_call.1} parent=0 // loop_pre_header
    _
  $region3: #{tpu_custom_call.1} parent=0 // loop_header
    %s11 = sphi 0, %s15
    %p12 = scmp.ge.s32.totalorder %s11, 6
    %s18 = sphi 0, %s30
    %s19 = sphi 0, %s26
    %s20 = sphi 0, %s18
    %s21 = sphi 0, %s19
    %s22 = sphi 0, %s20
    %s23 = sphi 0, %s21
    %s33 = sphi 0, %s35
    %s36 = sphi 0, %s33
    %s37 = sphi 0, %s36
    %s53 = sphi 0, %s37
    %s57 = sphi 0, %s57
    %s59 = sphi 0, %s57
    %s60 = sphi 0, %s59
    %s74 = sphi 0, %s60
    %s78 = sphi 0, %s78
    %s80 = sphi 0, %s78
    %s81 = sphi 0, %s80
    %s95 = sphi 0, %s81
    %s99 = sphi 0, %s99
    %s101 = sphi 0, %s99
    %s102 = sphi 0, %s101
    %s116 = sphi 0, %s102
    %s124 = sphi 0, %s126
    %s127 = sphi 0, %s124
    %s128 = sphi 0, %s127
    %s144 = sphi 0, %s128
    %s152 = sphi 0, %s154
    %s155 = sphi 0, %s152
    %s156 = sphi 0, %s155
    %s172 = sphi 0, %s156
  $region4: #{tpu_custom_call.1} parent=0 // loop_header_branch
    %14 = sbr.rel (%p12) target = $region8
  $region5: #{tpu_custom_call.1} parent=0 // loop_body
    %s16 = ssub.s32 %s11, 1
    %s17 = ssub.s32 %s11, 2
    %s24 = sadd.s32 1, %s19
    %p25 = scmp.ge.s32.totalorder %s24, 2
    %s26 = scalar_select %p25, 0, %s24
    %s27 = sadd.s32 1, %s18
    %s28 = scalar_select %p25, %s27, %s18
    %p29 = scmp.ge.s32.totalorder %s28, 2
    %s30 = scalar_select %p29, 0, %s28
    %s31 = ssub.s32 %s19, %s26
    %p32 = scmp.eq.s32.totalorder %s31, 0
    %s34 = sadd.s32 %s33, 1
    %s35 = scalar_select %p32, %s33, %s34
    %p38 = pneg %p32
    %p39 = scmp.eq.s32.totalorder %s11, 3
    %p40 = por %p38, %p39
    %p41 = scmp.ne.s32.totalorder %s33, %s36
    %p42 = scmp.eq.s32.totalorder %s11, 0
    %p43 = por %p41, %p42
    %p44 = scmp.ne.s32.totalorder %s33, %s36
    %p45 = scmp.eq.s32.totalorder %s16, 3
    %p46 = por %p44, %p45
    %p47 = scmp.ne.s32.totalorder %s36, %s37
    %p48 = scmp.eq.s32.totalorder %s16, 0
    %p49 = por %p47, %p48
    %p50 = scmp.ne.s32.totalorder %s36, %s37
    %p51 = scmp.eq.s32.totalorder %s17, 3
    %p52 = por %p50, %p51
    %p54 = scmp.ne.s32.totalorder %s37, %s53
    %p55 = scmp.eq.s32.totalorder %s17, 0
    %p56 = por %p54, %p55
    %s58 = sadd.s32 %s57, 1
    %p61 = scmp.eq.s32.totalorder %s11, 3
    %p62 = scmp.ne.s32.totalorder %s57, %s59
    %p63 = scmp.eq.s32.totalorder %s11, 0
    %p64 = por %p62, %p63
    %p65 = scmp.ne.s32.totalorder %s57, %s59
    %p66 = scmp.eq.s32.totalorder %s16, 3
    %p67 = por %p65, %p66
    %p68 = scmp.ne.s32.totalorder %s59, %s60
    %p69 = scmp.eq.s32.totalorder %s16, 0
    %p70 = por %p68, %p69
    %p71 = scmp.ne.s32.totalorder %s59, %s60
    %p72 = scmp.eq.s32.totalorder %s17, 3
    %p73 = por %p71, %p72
    %p75 = scmp.ne.s32.totalorder %s60, %s74
    %p76 = scmp.eq.s32.totalorder %s17, 0
    %p77 = por %p75, %p76
    %s79 = sadd.s32 %s78, 1
    %p82 = scmp.eq.s32.totalorder %s11, 3
    %p83 = scmp.ne.s32.totalorder %s78, %s80
    %p84 = scmp.eq.s32.totalorder %s11, 0
    %p85 = por %p83, %p84
    %p86 = scmp.ne.s32.totalorder %s78, %s80
    %p87 = scmp.eq.s32.totalorder %s16, 3
    %p88 = por %p86, %p87
    %p89 = scmp.ne.s32.totalorder %s80, %s81
    %p90 = scmp.eq.s32.totalorder %s16, 0
    %p91 = por %p89, %p90
    %p92 = scmp.ne.s32.totalorder %s80, %s81
    %p93 = scmp.eq.s32.totalorder %s17, 3
    %p94 = por %p92, %p93
    %p96 = scmp.ne.s32.totalorder %s81, %s95
    %p97 = scmp.eq.s32.totalorder %s17, 0
    %p98 = por %p96, %p97
    %s100 = sadd.s32 %s99, 1
    %p103 = scmp.eq.s32.totalorder %s11, 3
    %p104 = scmp.ne.s32.totalorder %s99, %s101
    %p105 = scmp.eq.s32.totalorder %s11, 0
    %p106 = por %p104, %p105
    %p107 = scmp.ne.s32.totalorder %s99, %s101
    %p108 = scmp.eq.s32.totalorder %s16, 3
    %p109 = por %p107, %p108
    %p110 = scmp.ne.s32.totalorder %s101, %s102
    %p111 = scmp.eq.s32.totalorder %s16, 0
    %p112 = por %p110, %p111
    %p113 = scmp.ne.s32.totalorder %s101, %s102
    %p114 = scmp.eq.s32.totalorder %s17, 3
    %p115 = por %p113, %p114
    %p117 = scmp.ne.s32.totalorder %s102, %s116
    %p118 = scmp.eq.s32.totalorder %s17, 0
    %p119 = por %p117, %p118
    %s120 = smul.u32 %s18, %s19
    %s121 = smul.u32 %s30, %s26
    %s122 = ssub.s32 %s120, %s121
    %p123 = scmp.eq.s32.totalorder %s122, 0
    %s125 = sadd.s32 %s124, 1
    %s126 = scalar_select %p123, %s124, %s125
    %p129 = pneg %p123
    %p130 = scmp.eq.s32.totalorder %s11, 3
    %p131 = por %p129, %p130
    %p132 = scmp.ne.s32.totalorder %s124, %s127
    %p133 = scmp.eq.s32.totalorder %s11, 0
    %p134 = por %p132, %p133
    %p135 = scmp.ne.s32.totalorder %s124, %s127
    %p136 = scmp.eq.s32.totalorder %s16, 3
    %p137 = por %p135, %p136
    %p138 = scmp.ne.s32.totalorder %s127, %s128
    %p139 = scmp.eq.s32.totalorder %s16, 0
    %p140 = por %p138, %p139
    %p141 = scmp.ne.s32.totalorder %s127, %s128
    %p142 = scmp.eq.s32.totalorder %s17, 3
    %p143 = por %p141, %p142
    %p145 = scmp.ne.s32.totalorder %s128, %s144
    %p146 = scmp.eq.s32.totalorder %s17, 0
    %p147 = por %p145, %p146
    %s148 = smul.u32 %s18, %s19
    %s149 = smul.u32 %s30, %s26
    %s150 = ssub.s32 %s148, %s149
    %p151 = scmp.eq.s32.totalorder %s150, 0
    %s153 = sadd.s32 %s152, 1
    %s154 = scalar_select %p151, %s152, %s153
    %p157 = pneg %p151
    %p158 = scmp.eq.s32.totalorder %s11, 3
    %p159 = por %p157, %p158
    %p160 = scmp.ne.s32.totalorder %s152, %s155
    %p161 = scmp.eq.s32.totalorder %s11, 0
    %p162 = por %p160, %p161
    %p163 = scmp.ne.s32.totalorder %s152, %s155
    %p164 = scmp.eq.s32.totalorder %s16, 3
    %p165 = por %p163, %p164
    %p166 = scmp.ne.s32.totalorder %s155, %s156
    %p167 = scmp.eq.s32.totalorder %s16, 0
    %p168 = por %p166, %p167
    %p169 = scmp.ne.s32.totalorder %s155, %s156
    %p170 = scmp.eq.s32.totalorder %s17, 3
    %p171 = por %p169, %p170
    %p173 = scmp.ne.s32.totalorder %s156, %s172
    %p174 = scmp.eq.s32.totalorder %s17, 0
    %p175 = por %p173, %p174
    %p176 = scmp.le.s32.totalorder 1, %s11
    %p177 = scmp.lt.s32.totalorder %s11, 5
    %p178 = pnand %p176, %p177
    %p179 = pneg %p178
    // Predicated region
    $region9: #{tpu_custom_call.1} parent=5 // pred_check
      _
    $region10: #{tpu_custom_call.1} parent=5 // pred_check_branch
      %181 = sbr.rel (%p178) target = $region12
    $region11: #{tpu_custom_call.1} parent=5 // pred_region
      %s182 = ssub.s32 %s11, 1
      // Predicated region
      $region13: #{tpu_custom_call.1} parent=11 // pred_check
        %p183 = pneg %p70
      $region14: #{tpu_custom_call.1} parent=11 // pred_check_branch
        %185 = sbr.rel (%p183) target = $region16
      $region15: #{tpu_custom_call.1} parent=11 // pred_region
        _
      $region16: #{tpu_custom_call.1} parent=11 // pred_fallthru
        _
      // Predicated region
      $region17: #{tpu_custom_call.1} parent=11 // pred_check
        %p186 = pneg %p91
      $region18: #{tpu_custom_call.1} parent=11 // pred_check_branch
        %188 = sbr.rel (%p186) target = $region20
      $region19: #{tpu_custom_call.1} parent=11 // pred_region
        _
      $region20: #{tpu_custom_call.1} parent=11 // pred_fallthru
        _
      // Predicated region
      $region21: #{tpu_custom_call.1} parent=11 // pred_check
        %p189 = pneg %p112
      $region22: #{tpu_custom_call.1} parent=11 // pred_check_branch
        %191 = sbr.rel (%p189) target = $region24
      $region23: #{tpu_custom_call.1} parent=11 // pred_region
        _
      $region24: #{tpu_custom_call.1} parent=11 // pred_fallthru
        _
    $region12: #{tpu_custom_call.1} parent=5 // pred_fallthru
      _
    %p192 = scmp.lt.s32.totalorder %s11, 4
    // Predicated region
    $region25: #{tpu_custom_call.1} parent=5 // pred_check
      %p193 = pneg %p192
    $region26: #{tpu_custom_call.1} parent=5 // pred_check_branch
      %195 = sbr.rel (%p193) target = $region28
    $region27: #{tpu_custom_call.1} parent=5 // pred_region
      // Predicated region
      $region29: #{tpu_custom_call.1} parent=27 // pred_check
        %p196 = pneg %p43
      $region30: #{tpu_custom_call.1} parent=27 // pred_check_branch
        %198 = sbr.rel (%p196) target = $region32
      $region31: #{tpu_custom_call.1} parent=27 // pred_region
        %p199 = scmp.lt.s32.totalorder %s19, 1
        %s200 = scalar_select %p199, %s19, 1
        %s201 = smul.addr %s200, 8
        %s202 = smul.addr %s201, 8
        %s203 = scalar_lea.vmem %s0, %s202
      $region32: #{tpu_custom_call.1} parent=27 // pred_fallthru
        _
      // Predicated region
      $region33: #{tpu_custom_call.1} parent=27 // pred_check
        %p204 = pneg %p134
      $region34: #{tpu_custom_call.1} parent=27 // pred_check_branch
        %206 = sbr.rel (%p204) target = $region36
      $region35: #{tpu_custom_call.1} parent=27 // pred_region
        %s207 = smul.u32 %s18, %s19
        %p208 = scmp.lt.s32.totalorder %s207, 1
        %s209 = scalar_select %p208, %s207, 1
        %s210 = smul.addr %s209, 18
        %s211 = smul.addr %s210, 8
        %s212 = scalar_lea.vmem %s4, %s211
        %s213 = smul.u32 %s18, %s19
      $region36: #{tpu_custom_call.1} parent=27 // pred_fallthru
        _
    $region28: #{tpu_custom_call.1} parent=5 // pred_fallthru
      _
    %p214 = scmp.le.s32.totalorder 1, %s11
    %p215 = scmp.lt.s32.totalorder %s11, 5
    %p216 = pnand %p214, %p215
    %p217 = pneg %p216
    // Predicated region
    $region37: #{tpu_custom_call.1} parent=5 // pred_check
      _
    $region38: #{tpu_custom_call.1} parent=5 // pred_check_branch
      %219 = sbr.rel (%p216) target = $region40
    $region39: #{tpu_custom_call.1} parent=5 // pred_region
      %s220 = ssub.s32 %s11, 1
      %p221 = scmp.lt.s32.totalorder %s21, 1
      %s222 = scalar_select %p221, %s21, 1
      %s223 = smul.addr %s222, 8
      %s224 = smul.addr %s223, 8
      %s225 = scalar_lea.vmem %s0, %s224
      %p226 = pneg %p49
      %p227 = pneg %p46
      %p228 = pneg %p70
      %p229 = pneg %p67
      %p230 = pneg %p91
      %p231 = pneg %p88
      %p232 = pneg %p112
      %p233 = pneg %p109
      %s234 = smul.u32 %s20, %s21
      %p235 = scmp.lt.s32.totalorder %s234, 1
      %s236 = scalar_select %p235, %s234, 1
      %s237 = smul.addr %s236, 18
      %s238 = smul.addr %s237, 8
      %s239 = scalar_lea.vmem %s4, %s238
      %p240 = pneg %p140
      %p241 = pneg %p137
      %p242 = pneg %p168
      %p243 = pneg %p165
      %s244 = smul.u32 %s20, %s21
      %p245 = scmp.lt.s32.totalorder %s244, 1
      %s246 = scalar_select %p245, %s244, 1
      %s247 = smul.addr %s246, 18
      %s248 = smul.addr %s247, 8
      %s249 = scalar_lea.vmem %s5, %s248
      %p250 = scmp.lt.s32.totalorder %s21, 1
      %s251 = scalar_select %p250, %s21, 1
      %s252 = smul.addr %s251, 8
      %s253 = smul.addr %s252, 8
      %s254 = scalar_lea.vmem %s0, %s253
      %s255 = smul.u32 %s20, %s21
      %p256 = scmp.lt.s32.totalorder %s255, 1
      %s257 = scalar_select %p256, %s255, 1
      %s258 = smul.addr %s257, 18
      %s259 = smul.addr %s258, 8
      %s260 = scalar_lea.vmem %s4, %s259
      %s261 = smul.u32 %s20, %s21
      %s262 = smul.u32 %s20, %s21
      %p263 = scmp.lt.s32.totalorder %s262, 1
      %s264 = scalar_select %p263, %s262, 1
      %s265 = smul.addr %s264, 18
      %s266 = smul.addr %s265, 8
      %s267 = scalar_lea.vmem %s5, %s266
      %s268 = smul.u32 %s20, %s21
      %p269 = scmp.eq.s32.totalorder %s20, 0
      %p270 = scmp.eq.s32.totalorder %s21, 0
      %p271 = pnand %p269, %p270
      %p272 = pneg %p271
      // Predicated region
      $region41: #{tpu_custom_call.1} parent=39 // pred_check
        _
      $region42: #{tpu_custom_call.1} parent=39 // pred_check_branch
        %274 = sbr.rel (%p271) target = $region44
      $region43: #{tpu_custom_call.1} parent=39 // pred_region
        %vm275 = vcmask 7168
        %276 = vst.msk [vmem:[#allocation2] sm:$0xff] %vm275, 0.0
        %277 = vst.msk [vmem:[#allocation2 + $0x8] sm:$0xff] %vm275, 0.0
        %278 = vst.msk [vmem:[#allocation2 + $0x10] sm:$0xff] %vm275, 0.0
        %279 = vst.msk [vmem:[#allocation2 + $0x18] sm:$0xff] %vm275, 0.0
        %280 = vst.msk [vmem:[#allocation2 + $0x20] sm:$0xff] %vm275, 0.0
        %281 = vst.msk [vmem:[#allocation2 + $0x28] sm:$0xff] %vm275, 0.0
        %282 = vst.msk [vmem:[#allocation2 + $0x30] sm:$0xff] %vm275, 0.0
        %283 = vst.msk [vmem:[#allocation2 + $0x38] sm:$0xff] %vm275, 0.0
        %284 = vst.msk [vmem:[#allocation2 + $0x40] sm:$0xff] %vm275, 0.0
        %285 = vst.msk [vmem:[#allocation2 + $0x48] sm:$0xff] %vm275, 0.0
        %286 = vst.msk [vmem:[#allocation2 + $0x50] sm:$0xff] %vm275, 0.0
        %287 = vst.msk [vmem:[#allocation2 + $0x58] sm:$0xff] %vm275, 0.0
        %288 = vst.msk [vmem:[#allocation2 + $0x60] sm:$0xff] %vm275, 0.0
        %289 = vst.msk [vmem:[#allocation2 + $0x68] sm:$0xff] %vm275, 0.0
        %290 = vst.msk [vmem:[#allocation2 + $0x70] sm:$0xff] %vm275, 0.0
        %291 = vst.msk [vmem:[#allocation2 + $0x78] sm:$0xff] %vm275, 0.0
        %292 = vst.msk [vmem:[#allocation2 + $0x80] sm:$0xff] %vm275, 0.0
        %293 = vst.msk [vmem:[#allocation2 + $0x88] sm:$0xff] %vm275, 0.0
        %294 = vst.msk [vmem:[#allocation3] sm:$0xff] %vm275, 0.0
        %295 = vst.msk [vmem:[#allocation3 + $0x8] sm:$0xff] %vm275, 0.0
        %296 = vst.msk [vmem:[#allocation3 + $0x10] sm:$0xff] %vm275, 0.0
        %297 = vst.msk [vmem:[#allocation3 + $0x18] sm:$0xff] %vm275, 0.0
        %298 = vst.msk [vmem:[#allocation3 + $0x20] sm:$0xff] %vm275, 0.0
        %299 = vst.msk [vmem:[#allocation3 + $0x28] sm:$0xff] %vm275, 0.0
        %300 = vst.msk [vmem:[#allocation3 + $0x30] sm:$0xff] %vm275, 0.0
        %301 = vst.msk [vmem:[#allocation3 + $0x38] sm:$0xff] %vm275, 0.0
        %302 = vst.msk [vmem:[#allocation3 + $0x40] sm:$0xff] %vm275, 0.0
        %303 = vst.msk [vmem:[#allocation3 + $0x48] sm:$0xff] %vm275, 0.0
        %304 = vst.msk [vmem:[#allocation3 + $0x50] sm:$0xff] %vm275, 0.0
        %305 = vst.msk [vmem:[#allocation3 + $0x58] sm:$0xff] %vm275, 0.0
        %306 = vst.msk [vmem:[#allocation3 + $0x60] sm:$0xff] %vm275, 0.0
        %307 = vst.msk [vmem:[#allocation3 + $0x68] sm:$0xff] %vm275, 0.0
        %308 = vst.msk [vmem:[#allocation3 + $0x70] sm:$0xff] %vm275, 0.0
        %309 = vst.msk [vmem:[#allocation3 + $0x78] sm:$0xff] %vm275, 0.0
        %310 = vst.msk [vmem:[#allocation3 + $0x80] sm:$0xff] %vm275, 0.0
        %311 = vst.msk [vmem:[#allocation3 + $0x88] sm:$0xff] %vm275, 0.0
      $region44: #{tpu_custom_call.1} parent=39 // pred_fallthru
        _
      // Predicated region
      $region45: #{tpu_custom_call.1} parent=39 // pred_check
        %p312 = pneg %p269
      $region46: #{tpu_custom_call.1} parent=39 // pred_check_branch
        %314 = sbr.rel (%p312) target = $region48
      $region47: #{tpu_custom_call.1} parent=39 // pred_region
        %v315 = vld [vmem:[%s1] sm:$0xff]
        %v316 = vld [vmem:[%s1 + $0x8] sm:$0xff]
        %v317 = vld [vmem:[%s1 + $0x10] sm:$0xff]
        %v318 = vld [vmem:[%s1 + $0x18] sm:$0xff]
        %v319 = vld [vmem:[%s1 + $0x20] sm:$0xff]
        %v320 = vld [vmem:[%s1 + $0x28] sm:$0xff]
        %v321 = vld [vmem:[%s1 + $0x30] sm:$0xff]
        %v322 = vld [vmem:[%s1 + $0x38] sm:$0xff]
        %v323 = vld [vmem:[%s1 + $0x40] sm:$0xff]
        %v324 = vld [vmem:[%s1 + $0x48] sm:$0xff]
        %v325 = vld [vmem:[%s1 + $0x50] sm:$0xff]
        %v326 = vld [vmem:[%s1 + $0x58] sm:$0xff]
        %v327 = vld [vmem:[%s1 + $0x60] sm:$0xff]
        %v328 = vld [vmem:[%s1 + $0x68] sm:$0xff]
        %v329 = vld [vmem:[%s1 + $0x70] sm:$0xff]
        %v330 = vld [vmem:[%s1 + $0x78] sm:$0xff]
        %v331 = vld [vmem:[%s1 + $0x80] sm:$0xff]
        %v332 = vld [vmem:[%s1 + $0x88] sm:$0xff]
        %v333 = vld [vmem:[%s254] sm:$0xff]
        %v334 = vld [vmem:[%s254 + $0x8] sm:$0xff]
        %v335 = vld [vmem:[%s254 + $0x10] sm:$0xff]
        %v336 = vld [vmem:[%s254 + $0x18] sm:$0xff]
        %v337 = vld [vmem:[%s254 + $0x20] sm:$0xff]
        %v338 = vld [vmem:[%s254 + $0x28] sm:$0xff]
        %v339 = vld [vmem:[%s254 + $0x30] sm:$0xff]
        %v340 = vld [vmem:[%s254 + $0x38] sm:$0xff]
        %vm341 = vcmask 523264
        %v343 = vsel %vm341, %v315, 0
        %v346 = vsel %vm341, %v316, 0
        %v349 = vsel %vm341, %v317, 0
        %v352 = vsel %vm341, %v318, 0
        %v355 = vsel %vm341, %v319, 0
        %v358 = vsel %vm341, %v320, 0
        %v361 = vsel %vm341, %v321, 0
        %v364 = vsel %vm341, %v322, 0
        %v367 = vsel %vm341, %v323, 0
        %v370 = vsel %vm341, %v324, 0
        %v373 = vsel %vm341, %v325, 0
        %v376 = vsel %vm341, %v326, 0
        %v379 = vsel %vm341, %v327, 0
        %v382 = vsel %vm341, %v328, 0
        %v385 = vsel %vm341, %v329, 0
        %v388 = vsel %vm341, %v330, 0
        %v391 = vsel %vm341, %v331, 0
        %v394 = vsel %vm341, %v332, 0
        %396 = vmatprep.subr.mxu0 0.0
        %397 = vmatpush1.msra.mxu0 0.0
        %398 = vmatprep.subr.mxu0 0.0
        %399 = vmatpush1.msra.mxu0 0.0
        %400 = vmatprep.subr.mxu0 0.0
        %401 = vmatpush1.msra.mxu0 0.0
        %402 = vmatprep.subr.mxu0 0.0
        %403 = vmatpush1.msra.mxu0 0.0
        %404 = vmatprep.subr.mxu0 0.0
        %405 = vmatpush1.msra.mxu0 0.0
        %406 = vmatprep.subr.mxu0 0.0
        %407 = vmatpush1.msra.mxu0 0.0
        %408 = vmatprep.subr.mxu0 0.0
        %409 = vmatpush1.msra.mxu0 0.0
        %410 = vmatprep.subr.mxu0 0.0
        %411 = vmatpush1.msra.mxu0 0.0
        %412 = vmatprep.subr.mxu0 0.0
        %413 = vmatpush1.msra.mxu0 %v340
        %414 = vmatprep.subr.mxu0 0.0
        %415 = vmatpush1.msra.mxu0 %v339
        %416 = vmatprep.subr.mxu0 0.0
        %417 = vmatpush1.msra.mxu0 %v338
        %418 = vmatprep.subr.mxu0 0.0
        %419 = vmatpush1.msra.mxu0 %v337
        %420 = vmatprep.subr.mxu0 0.0
        %421 = vmatpush1.msra.mxu0 %v336
        %422 = vmatprep.subr.mxu0 0.0
        %423 = vmatpush1.msra.mxu0 %v335
        %424 = vmatprep.subr.mxu0 0.0
        %425 = vmatpush1.msra.mxu0 %v334
        %426 = vmatprep.subr.mxu0 0.0
        %427 = vmatpush1.msra.mxu0 %v333
        %428 = vmatprep.subr.mxu0 0.0
        %429 = vmatpush2.msra.mxu0 0.0
        %430 = vmatprep.subr.mxu0 0.0
        %431 = vmatpush2.msra.mxu0 0.0
        %432 = vmatprep.subr.mxu0 0.0
        %433 = vmatpush2.msra.mxu0 0.0
        %434 = vmatprep.subr.mxu0 0.0
        %435 = vmatpush2.msra.mxu0 0.0
        %436 = vmatprep.subr.mxu0 0.0
        %437 = vmatpush2.msra.mxu0 0.0
        %438 = vmatprep.subr.mxu0 0.0
        %439 = vmatpush2.msra.mxu0 0.0
        %440 = vmatprep.subr.mxu0 0.0
        %441 = vmatpush2.msra.mxu0 0.0
        %442 = vmatprep.subr.mxu0 0.0
        %443 = vmatpush2.msra.mxu0 0.0
        %444 = vmatprep.subr.mxu0 0.0
        %445 = vmatpush2.msra.mxu0 0.0
        %446 = vmatprep.subr.mxu0 0.0
        %447 = vmatpush2.msra.mxu0 0.0
        %448 = vmatprep.subr.mxu0 0.0
        %449 = vmatpush2.msra.mxu0 0.0
        %450 = vmatprep.subr.mxu0 0.0
        %451 = vmatpush2.msra.mxu0 0.0
        %452 = vmatprep.subr.mxu0 0.0
        %453 = vmatpush2.msra.mxu0 0.0
        %454 = vmatprep.subr.mxu0 0.0
        %455 = vmatpush2.msra.mxu0 0.0
        %456 = vmatprep.subr.mxu0 0.0
        %457 = vmatpush2.msra.mxu0 0.0
        %458 = vmatprep.subr.mxu0 0.0
        %459 = vmatpush2.msra.mxu0 0.0
        %460 = vmatprep.mubr.f32.mxu0 0.0
        %461 = vmatmul.mubr.f32.gmra.mxu0 %v343
        %v462 = vpop.f32.mrf.mxu0
        %v463 = vadd.f32 0.0, %v462
        %v464 = vpop.f32.mrf.mxu0
        %465 = vmatprep.mubr.f32.mxu0 0.0
        %466 = vmatmul.mubr.f32.gmra.mxu0 %v346
        %v467 = vpop.f32.mrf.mxu0
        %v468 = vadd.f32 0.0, %v467
        %v469 = vpop.f32.mrf.mxu0
        %470 = vmatprep.mubr.f32.mxu0 0.0
        %471 = vmatmul.mubr.f32.gmra.mxu0 %v349
        %v472 = vpop.f32.mrf.mxu0
        %v473 = vadd.f32 0.0, %v472
        %v474 = vpop.f32.mrf.mxu0
        %475 = vmatprep.mubr.f32.mxu0 0.0
        %476 = vmatmul.mubr.f32.gmra.mxu0 %v352
        %v477 = vpop.f32.mrf.mxu0
        %v478 = vadd.f32 0.0, %v477
        %v479 = vpop.f32.mrf.mxu0
        %480 = vmatprep.mubr.f32.mxu0 0.0
        %481 = vmatmul.mubr.f32.gmra.mxu0 %v355
        %v482 = vpop.f32.mrf.mxu0
        %v483 = vadd.f32 0.0, %v482
        %v484 = vpop.f32.mrf.mxu0
        %485 = vmatprep.mubr.f32.mxu0 0.0
        %486 = vmatmul.mubr.f32.gmra.mxu0 %v358
        %v487 = vpop.f32.mrf.mxu0
        %v488 = vadd.f32 0.0, %v487
        %v489 = vpop.f32.mrf.mxu0
        %490 = vmatprep.mubr.f32.mxu0 0.0
        %491 = vmatmul.mubr.f32.gmra.mxu0 %v361
        %v492 = vpop.f32.mrf.mxu0
        %v493 = vadd.f32 0.0, %v492
        %v494 = vpop.f32.mrf.mxu0
        %495 = vmatprep.mubr.f32.mxu0 0.0
        %496 = vmatmul.mubr.f32.gmra.mxu0 %v364
        %v497 = vpop.f32.mrf.mxu0
        %v498 = vadd.f32 0.0, %v497
        %v499 = vpop.f32.mrf.mxu0
        %500 = vmatprep.mubr.f32.mxu0 0.0
        %501 = vmatmul.mubr.f32.gmra.mxu0 %v367
        %v502 = vpop.f32.mrf.mxu0
        %v503 = vadd.f32 0.0, %v502
        %v504 = vpop.f32.mrf.mxu0
        %505 = vmatprep.mubr.f32.mxu0 0.0
        %506 = vmatmul.mubr.f32.gmra.mxu0 %v370
        %v507 = vpop.f32.mrf.mxu0
        %v508 = vadd.f32 0.0, %v507
        %v509 = vpop.f32.mrf.mxu0
        %510 = vmatprep.mubr.f32.mxu0 0.0
        %511 = vmatmul.mubr.f32.gmra.mxu0 %v373
        %v512 = vpop.f32.mrf.mxu0
        %v513 = vadd.f32 0.0, %v512
        %v514 = vpop.f32.mrf.mxu0
        %515 = vmatprep.mubr.f32.mxu0 0.0
        %516 = vmatmul.mubr.f32.gmra.mxu0 %v376
        %v517 = vpop.f32.mrf.mxu0
        %v518 = vadd.f32 0.0, %v517
        %v519 = vpop.f32.mrf.mxu0
        %520 = vmatprep.mubr.f32.mxu0 0.0
        %521 = vmatmul.mubr.f32.gmra.mxu0 %v379
        %v522 = vpop.f32.mrf.mxu0
        %v523 = vadd.f32 0.0, %v522
        %v524 = vpop.f32.mrf.mxu0
        %525 = vmatprep.mubr.f32.mxu0 0.0
        %526 = vmatmul.mubr.f32.gmra.mxu0 %v382
        %v527 = vpop.f32.mrf.mxu0
        %v528 = vadd.f32 0.0, %v527
        %v529 = vpop.f32.mrf.mxu0
        %530 = vmatprep.mubr.f32.mxu0 0.0
        %531 = vmatmul.mubr.f32.gmra.mxu0 %v385
        %v532 = vpop.f32.mrf.mxu0
        %v533 = vadd.f32 0.0, %v532
        %v534 = vpop.f32.mrf.mxu0
        %535 = vmatprep.mubr.f32.mxu0 0.0
        %536 = vmatmul.mubr.f32.gmra.mxu0 %v388
        %v537 = vpop.f32.mrf.mxu0
        %v538 = vadd.f32 0.0, %v537
        %v539 = vpop.f32.mrf.mxu0
        %540 = vmatprep.mubr.f32.mxu0 0.0
        %541 = vmatmul.mubr.f32.gmra.mxu0 %v391
        %v542 = vpop.f32.mrf.mxu0
        %v543 = vadd.f32 0.0, %v542
        %v544 = vpop.f32.mrf.mxu0
        %545 = vmatprep.mubr.f32.mxu0 0.0
        %546 = vmatmul.mubr.f32.gmra.mxu0 %v394
        %v547 = vpop.f32.mrf.mxu0
        %v548 = vadd.f32 0.0, %v547
        %v549 = vpop.f32.mrf.mxu0
        %550 = vdwg.mxu0
        %v551 = vld [vmem:[#allocation2] sm:$0xff]
        %v552 = vld [vmem:[#allocation2 + $0x8] sm:$0xff]
        %v553 = vld [vmem:[#allocation2 + $0x10] sm:$0xff]
        %v554 = vld [vmem:[#allocation2 + $0x18] sm:$0xff]
        %v555 = vld [vmem:[#allocation2 + $0x20] sm:$0xff]
        %v556 = vld [vmem:[#allocation2 + $0x28] sm:$0xff]
        %v557 = vld [vmem:[#allocation2 + $0x30] sm:$0xff]
        %v558 = vld [vmem:[#allocation2 + $0x38] sm:$0xff]
        %v559 = vld [vmem:[#allocation2 + $0x40] sm:$0xff]
        %v560 = vld [vmem:[#allocation2 + $0x48] sm:$0xff]
        %v561 = vld [vmem:[#allocation2 + $0x50] sm:$0xff]
        %v562 = vld [vmem:[#allocation2 + $0x58] sm:$0xff]
        %v563 = vld [vmem:[#allocation2 + $0x60] sm:$0xff]
        %v564 = vld [vmem:[#allocation2 + $0x68] sm:$0xff]
        %v565 = vld [vmem:[#allocation2 + $0x70] sm:$0xff]
        %v566 = vld [vmem:[#allocation2 + $0x78] sm:$0xff]
        %v567 = vld [vmem:[#allocation2 + $0x80] sm:$0xff]
        %v568 = vld [vmem:[#allocation2 + $0x88] sm:$0xff]
        %v569 = vsel %vm341, %v463, 0.0
        %570 = vadd.xlane.f32.xlu0 %v569
        %v571 = vpop.xlane.xlu0 %570
        %v572 = vsel %vm341, %v468, 0.0
        %573 = vadd.xlane.f32.xlu0 %v572
        %v574 = vpop.xlane.xlu0 %573
        %v575 = vsel %vm341, %v473, 0.0
        %576 = vadd.xlane.f32.xlu0 %v575
        %v577 = vpop.xlane.xlu0 %576
        %v578 = vsel %vm341, %v478, 0.0
        %579 = vadd.xlane.f32.xlu0 %v578
        %v580 = vpop.xlane.xlu0 %579
        %v581 = vsel %vm341, %v483, 0.0
        %582 = vadd.xlane.f32.xlu0 %v581
        %v583 = vpop.xlane.xlu0 %582
        %v584 = vsel %vm341, %v488, 0.0
        %585 = vadd.xlane.f32.xlu0 %v584
        %v586 = vpop.xlane.xlu0 %585
        %v587 = vsel %vm341, %v493, 0.0
        %588 = vadd.xlane.f32.xlu0 %v587
        %v589 = vpop.xlane.xlu0 %588
        %v590 = vsel %vm341, %v498, 0.0
        %591 = vadd.xlane.f32.xlu0 %v590
        %v592 = vpop.xlane.xlu0 %591
        %v593 = vsel %vm341, %v503, 0.0
        %594 = vadd.xlane.f32.xlu0 %v593
        %v595 = vpop.xlane.xlu0 %594
        %v596 = vsel %vm341, %v508, 0.0
        %597 = vadd.xlane.f32.xlu0 %v596
        %v598 = vpop.xlane.xlu0 %597
        %v599 = vsel %vm341, %v513, 0.0
        %600 = vadd.xlane.f32.xlu0 %v599
        %v601 = vpop.xlane.xlu0 %600
        %v602 = vsel %vm341, %v518, 0.0
        %603 = vadd.xlane.f32.xlu0 %v602
        %v604 = vpop.xlane.xlu0 %603
        %v605 = vsel %vm341, %v523, 0.0
        %606 = vadd.xlane.f32.xlu0 %v605
        %v607 = vpop.xlane.xlu0 %606
        %v608 = vsel %vm341, %v528, 0.0
        %609 = vadd.xlane.f32.xlu0 %v608
        %v610 = vpop.xlane.xlu0 %609
        %v611 = vsel %vm341, %v533, 0.0
        %612 = vadd.xlane.f32.xlu0 %v611
        %v613 = vpop.xlane.xlu0 %612
        %v614 = vsel %vm341, %v538, 0.0
        %615 = vadd.xlane.f32.xlu0 %v614
        %v616 = vpop.xlane.xlu0 %615
        %v617 = vsel %vm341, %v543, 0.0
        %618 = vadd.xlane.f32.xlu0 %v617
        %v619 = vpop.xlane.xlu0 %618
        %v620 = vsel %vm341, %v548, 0.0
        %621 = vadd.xlane.f32.xlu0 %v620
        %v622 = vpop.xlane.xlu0 %621
        %v623 = vadd.f32 %v551, %v571
        %v624 = vadd.f32 %v552, %v574
        %v625 = vadd.f32 %v553, %v577
        %v626 = vadd.f32 %v554, %v580
        %v627 = vadd.f32 %v555, %v583
        %v628 = vadd.f32 %v556, %v586
        %v629 = vadd.f32 %v557, %v589
        %v630 = vadd.f32 %v558, %v592
        %v631 = vadd.f32 %v559, %v595
        %v632 = vadd.f32 %v560, %v598
        %v633 = vadd.f32 %v561, %v601
        %v634 = vadd.f32 %v562, %v604
        %v635 = vadd.f32 %v563, %v607
        %v636 = vadd.f32 %v564, %v610
        %v637 = vadd.f32 %v565, %v613
        %v638 = vadd.f32 %v566, %v616
        %v639 = vadd.f32 %v567, %v619
        %v640 = vadd.f32 %v568, %v622
        %vm641 = vcmask 7168
        %642 = vst.msk [vmem:[#allocation2] sm:$0xff] %vm641, %v623
        %643 = vst.msk [vmem:[#allocation2 + $0x8] sm:$0xff] %vm641, %v624
        %644 = vst.msk [vmem:[#allocation2 + $0x10] sm:$0xff] %vm641, %v625
        %645 = vst.msk [vmem:[#allocation2 + $0x18] sm:$0xff] %vm641, %v626
        %646 = vst.msk [vmem:[#allocation2 + $0x20] sm:$0xff] %vm641, %v627
        %647 = vst.msk [vmem:[#allocation2 + $0x28] sm:$0xff] %vm641, %v628
        %648 = vst.msk [vmem:[#allocation2 + $0x30] sm:$0xff] %vm641, %v629
        %649 = vst.msk [vmem:[#allocation2 + $0x38] sm:$0xff] %vm641, %v630
        %650 = vst.msk [vmem:[#allocation2 + $0x40] sm:$0xff] %vm641, %v631
        %651 = vst.msk [vmem:[#allocation2 + $0x48] sm:$0xff] %vm641, %v632
        %652 = vst.msk [vmem:[#allocation2 + $0x50] sm:$0xff] %vm641, %v633
        %653 = vst.msk [vmem:[#allocation2 + $0x58] sm:$0xff] %vm641, %v634
        %654 = vst.msk [vmem:[#allocation2 + $0x60] sm:$0xff] %vm641, %v635
        %655 = vst.msk [vmem:[#allocation2 + $0x68] sm:$0xff] %vm641, %v636
        %656 = vst.msk [vmem:[#allocation2 + $0x70] sm:$0xff] %vm641, %v637
        %657 = vst.msk [vmem:[#allocation2 + $0x78] sm:$0xff] %vm641, %v638
        %658 = vst.msk [vmem:[#allocation2 + $0x80] sm:$0xff] %vm641, %v639
        %659 = vst.msk [vmem:[#allocation2 + $0x88] sm:$0xff] %vm641, %v640
        %v660 = vld [vmem:[#allocation3] sm:$0xff]
        %v661 = vld [vmem:[#allocation3 + $0x8] sm:$0xff]
        %v662 = vld [vmem:[#allocation3 + $0x10] sm:$0xff]
        %v663 = vld [vmem:[#allocation3 + $0x18] sm:$0xff]
        %v664 = vld [vmem:[#allocation3 + $0x20] sm:$0xff]
        %v665 = vld [vmem:[#allocation3 + $0x28] sm:$0xff]
        %v666 = vld [vmem:[#allocation3 + $0x30] sm:$0xff]
        %v667 = vld [vmem:[#allocation3 + $0x38] sm:$0xff]
        %v668 = vld [vmem:[#allocation3 + $0x40] sm:$0xff]
        %v669 = vld [vmem:[#allocation3 + $0x48] sm:$0xff]
        %v670 = vld [vmem:[#allocation3 + $0x50] sm:$0xff]
        %v671 = vld [vmem:[#allocation3 + $0x58] sm:$0xff]
        %v672 = vld [vmem:[#allocation3 + $0x60] sm:$0xff]
        %v673 = vld [vmem:[#allocation3 + $0x68] sm:$0xff]
        %v674 = vld [vmem:[#allocation3 + $0x70] sm:$0xff]
        %v675 = vld [vmem:[#allocation3 + $0x78] sm:$0xff]
        %v676 = vld [vmem:[#allocation3 + $0x80] sm:$0xff]
        %v677 = vld [vmem:[#allocation3 + $0x88] sm:$0xff]
        %v678 = vmul.f32 %v463, %v463
        %v679 = vmul.f32 %v468, %v468
        %v680 = vmul.f32 %v473, %v473
        %v681 = vmul.f32 %v478, %v478
        %v682 = vmul.f32 %v483, %v483
        %v683 = vmul.f32 %v488, %v488
        %v684 = vmul.f32 %v493, %v493
        %v685 = vmul.f32 %v498, %v498
        %v686 = vmul.f32 %v503, %v503
        %v687 = vmul.f32 %v508, %v508
        %v688 = vmul.f32 %v513, %v513
        %v689 = vmul.f32 %v518, %v518
        %v690 = vmul.f32 %v523, %v523
        %v691 = vmul.f32 %v528, %v528
        %v692 = vmul.f32 %v533, %v533
        %v693 = vmul.f32 %v538, %v538
        %v694 = vmul.f32 %v543, %v543
        %v695 = vmul.f32 %v548, %v548
        %v696 = vsel %vm341, %v678, 0.0
        %697 = vadd.xlane.f32.xlu0 %v696
        %v698 = vpop.xlane.xlu0 %697
        %v699 = vsel %vm341, %v679, 0.0
        %700 = vadd.xlane.f32.xlu0 %v699
        %v701 = vpop.xlane.xlu0 %700
        %v702 = vsel %vm341, %v680, 0.0
        %703 = vadd.xlane.f32.xlu0 %v702
        %v704 = vpop.xlane.xlu0 %703
        %v705 = vsel %vm341, %v681, 0.0
        %706 = vadd.xlane.f32.xlu0 %v705
        %v707 = vpop.xlane.xlu0 %706
        %v708 = vsel %vm341, %v682, 0.0
        %709 = vadd.xlane.f32.xlu0 %v708
        %v710 = vpop.xlane.xlu0 %709
        %v711 = vsel %vm341, %v683, 0.0
        %712 = vadd.xlane.f32.xlu0 %v711
        %v713 = vpop.xlane.xlu0 %712
        %v714 = vsel %vm341, %v684, 0.0
        %715 = vadd.xlane.f32.xlu0 %v714
        %v716 = vpop.xlane.xlu0 %715
        %v717 = vsel %vm341, %v685, 0.0
        %718 = vadd.xlane.f32.xlu0 %v717
        %v719 = vpop.xlane.xlu0 %718
        %v720 = vsel %vm341, %v686, 0.0
        %721 = vadd.xlane.f32.xlu0 %v720
        %v722 = vpop.xlane.xlu0 %721
        %v723 = vsel %vm341, %v687, 0.0
        %724 = vadd.xlane.f32.xlu0 %v723
        %v725 = vpop.xlane.xlu0 %724
        %v726 = vsel %vm341, %v688, 0.0
        %727 = vadd.xlane.f32.xlu0 %v726
        %v728 = vpop.xlane.xlu0 %727
        %v729 = vsel %vm341, %v689, 0.0
        %730 = vadd.xlane.f32.xlu0 %v729
        %v731 = vpop.xlane.xlu0 %730
        %v732 = vsel %vm341, %v690, 0.0
        %733 = vadd.xlane.f32.xlu0 %v732
        %v734 = vpop.xlane.xlu0 %733
        %v735 = vsel %vm341, %v691, 0.0
        %736 = vadd.xlane.f32.xlu0 %v735
        %v737 = vpop.xlane.xlu0 %736
        %v738 = vsel %vm341, %v692, 0.0
        %739 = vadd.xlane.f32.xlu0 %v738
        %v740 = vpop.xlane.xlu0 %739
        %v741 = vsel %vm341, %v693, 0.0
        %742 = vadd.xlane.f32.xlu0 %v741
        %v743 = vpop.xlane.xlu0 %742
        %v744 = vsel %vm341, %v694, 0.0
        %745 = vadd.xlane.f32.xlu0 %v744
        %v746 = vpop.xlane.xlu0 %745
        %v747 = vsel %vm341, %v695, 0.0
        %748 = vadd.xlane.f32.xlu0 %v747
        %v749 = vpop.xlane.xlu0 %748
        %v750 = vadd.f32 %v660, %v698
        %v751 = vadd.f32 %v661, %v701
        %v752 = vadd.f32 %v662, %v704
        %v753 = vadd.f32 %v663, %v707
        %v754 = vadd.f32 %v664, %v710
        %v755 = vadd.f32 %v665, %v713
        %v756 = vadd.f32 %v666, %v716
        %v757 = vadd.f32 %v667, %v719
        %v758 = vadd.f32 %v668, %v722
        %v759 = vadd.f32 %v669, %v725
        %v760 = vadd.f32 %v670, %v728
        %v761 = vadd.f32 %v671, %v731
        %v762 = vadd.f32 %v672, %v734
        %v763 = vadd.f32 %v673, %v737
        %v764 = vadd.f32 %v674, %v740
        %v765 = vadd.f32 %v675, %v743
        %v766 = vadd.f32 %v676, %v746
        %v767 = vadd.f32 %v677, %v749
        %768 = vst.msk [vmem:[#allocation3] sm:$0xff] %vm641, %v750
        %769 = vst.msk [vmem:[#allocation3 + $0x8] sm:$0xff] %vm641, %v751
        %770 = vst.msk [vmem:[#allocation3 + $0x10] sm:$0xff] %vm641, %v752
        %771 = vst.msk [vmem:[#allocation3 + $0x18] sm:$0xff] %vm641, %v753
        %772 = vst.msk [vmem:[#allocation3 + $0x20] sm:$0xff] %vm641, %v754
        %773 = vst.msk [vmem:[#allocation3 + $0x28] sm:$0xff] %vm641, %v755
        %774 = vst.msk [vmem:[#allocation3 + $0x30] sm:$0xff] %vm641, %v756
        %775 = vst.msk [vmem:[#allocation3 + $0x38] sm:$0xff] %vm641, %v757
        %776 = vst.msk [vmem:[#allocation3 + $0x40] sm:$0xff] %vm641, %v758
        %777 = vst.msk [vmem:[#allocation3 + $0x48] sm:$0xff] %vm641, %v759
        %778 = vst.msk [vmem:[#allocation3 + $0x50] sm:$0xff] %vm641, %v760
        %779 = vst.msk [vmem:[#allocation3 + $0x58] sm:$0xff] %vm641, %v761
        %780 = vst.msk [vmem:[#allocation3 + $0x60] sm:$0xff] %vm641, %v762
        %781 = vst.msk [vmem:[#allocation3 + $0x68] sm:$0xff] %vm641, %v763
        %782 = vst.msk [vmem:[#allocation3 + $0x70] sm:$0xff] %vm641, %v764
        %783 = vst.msk [vmem:[#allocation3 + $0x78] sm:$0xff] %vm641, %v765
        %784 = vst.msk [vmem:[#allocation3 + $0x80] sm:$0xff] %vm641, %v766
        %785 = vst.msk [vmem:[#allocation3 + $0x88] sm:$0xff] %vm641, %v767
      $region48: #{tpu_custom_call.1} parent=39 // pred_fallthru
        _
      %p786 = scmp.eq.s32.totalorder %s21, 1
      %p787 = pnand %p269, %p786
      %p788 = pneg %p787
      // Predicated region
      $region49: #{tpu_custom_call.1} parent=39 // pred_check
        _
      $region50: #{tpu_custom_call.1} parent=39 // pred_check_branch
        %790 = sbr.rel (%p787) target = $region52
      $region51: #{tpu_custom_call.1} parent=39 // pred_region
        %v791 = vld [vmem:[#allocation2] sm:$0xff]
        %v792 = vld [vmem:[#allocation2 + $0x8] sm:$0xff]
        %v793 = vld [vmem:[#allocation2 + $0x10] sm:$0xff]
        %v794 = vld [vmem:[#allocation2 + $0x18] sm:$0xff]
        %v795 = vld [vmem:[#allocation2 + $0x20] sm:$0xff]
        %v796 = vld [vmem:[#allocation2 + $0x28] sm:$0xff]
        %v797 = vld [vmem:[#allocation2 + $0x30] sm:$0xff]
        %v798 = vld [vmem:[#allocation2 + $0x38] sm:$0xff]
        %v799 = vld [vmem:[#allocation2 + $0x40] sm:$0xff]
        %v800 = vld [vmem:[#allocation2 + $0x48] sm:$0xff]
        %v801 = vld [vmem:[#allocation2 + $0x50] sm:$0xff]
        %v802 = vld [vmem:[#allocation2 + $0x58] sm:$0xff]
        %v803 = vld [vmem:[#allocation2 + $0x60] sm:$0xff]
        %v804 = vld [vmem:[#allocation2 + $0x68] sm:$0xff]
        %v805 = vld [vmem:[#allocation2 + $0x70] sm:$0xff]
        %v806 = vld [vmem:[#allocation2 + $0x78] sm:$0xff]
        %v807 = vld [vmem:[#allocation2 + $0x80] sm:$0xff]
        %v808 = vld [vmem:[#allocation2 + $0x88] sm:$0xff]
        %v809 = vmul.f32 %v791, 0.0078125
        %v810 = vmul.f32 %v792, 0.0078125
        %v811 = vmul.f32 %v793, 0.0078125
        %v812 = vmul.f32 %v794, 0.0078125
        %v813 = vmul.f32 %v795, 0.0078125
        %v814 = vmul.f32 %v796, 0.0078125
        %v815 = vmul.f32 %v797, 0.0078125
        %v816 = vmul.f32 %v798, 0.0078125
        %v817 = vmul.f32 %v799, 0.0078125
        %v818 = vmul.f32 %v800, 0.0078125
        %v819 = vmul.f32 %v801, 0.0078125
        %v820 = vmul.f32 %v802, 0.0078125
        %v821 = vmul.f32 %v803, 0.0078125
        %v822 = vmul.f32 %v804, 0.0078125
        %v823 = vmul.f32 %v805, 0.0078125
        %v824 = vmul.f32 %v806, 0.0078125
        %v825 = vmul.f32 %v807, 0.0078125
        %v826 = vmul.f32 %v808, 0.0078125
        %v827 = vld [vmem:[#allocation3] sm:$0xff]
        %v828 = vld [vmem:[#allocation3 + $0x8] sm:$0xff]
        %v829 = vld [vmem:[#allocation3 + $0x10] sm:$0xff]
        %v830 = vld [vmem:[#allocation3 + $0x18] sm:$0xff]
        %v831 = vld [vmem:[#allocation3 + $0x20] sm:$0xff]
        %v832 = vld [vmem:[#allocation3 + $0x28] sm:$0xff]
        %v833 = vld [vmem:[#allocation3 + $0x30] sm:$0xff]
        %v834 = vld [vmem:[#allocation3 + $0x38] sm:$0xff]
        %v835 = vld [vmem:[#allocation3 + $0x40] sm:$0xff]
        %v836 = vld [vmem:[#allocation3 + $0x48] sm:$0xff]
        %v837 = vld [vmem:[#allocation3 + $0x50] sm:$0xff]
        %v838 = vld [vmem:[#allocation3 + $0x58] sm:$0xff]
        %v839 = vld [vmem:[#allocation3 + $0x60] sm:$0xff]
        %v840 = vld [vmem:[#allocation3 + $0x68] sm:$0xff]
        %v841 = vld [vmem:[#allocation3 + $0x70] sm:$0xff]
        %v842 = vld [vmem:[#allocation3 + $0x78] sm:$0xff]
        %v843 = vld [vmem:[#allocation3 + $0x80] sm:$0xff]
        %v844 = vld [vmem:[#allocation3 + $0x88] sm:$0xff]
        %v845 = vmul.f32 %v827, 0.0078125
        %v846 = vmul.f32 %v828, 0.0078125
        %v847 = vmul.f32 %v829, 0.0078125
        %v848 = vmul.f32 %v830, 0.0078125
        %v849 = vmul.f32 %v831, 0.0078125
        %v850 = vmul.f32 %v832, 0.0078125
        %v851 = vmul.f32 %v833, 0.0078125
        %v852 = vmul.f32 %v834, 0.0078125
        %v853 = vmul.f32 %v835, 0.0078125
        %v854 = vmul.f32 %v836, 0.0078125
        %v855 = vmul.f32 %v837, 0.0078125
        %v856 = vmul.f32 %v838, 0.0078125
        %v857 = vmul.f32 %v839, 0.0078125
        %v858 = vmul.f32 %v840, 0.0078125
        %v859 = vmul.f32 %v841, 0.0078125
        %v860 = vmul.f32 %v842, 0.0078125
        %v861 = vmul.f32 %v843, 0.0078125
        %v862 = vmul.f32 %v844, 0.0078125
        %v863 = vmul.f32 %v809, %v809
        %v864 = vmul.f32 %v810, %v810
        %v865 = vmul.f32 %v811, %v811
        %v866 = vmul.f32 %v812, %v812
        %v867 = vmul.f32 %v813, %v813
        %v868 = vmul.f32 %v814, %v814
        %v869 = vmul.f32 %v815, %v815
        %v870 = vmul.f32 %v816, %v816
        %v871 = vmul.f32 %v817, %v817
        %v872 = vmul.f32 %v818, %v818
        %v873 = vmul.f32 %v819, %v819
        %v874 = vmul.f32 %v820, %v820
        %v875 = vmul.f32 %v821, %v821
        %v876 = vmul.f32 %v822, %v822
        %v877 = vmul.f32 %v823, %v823
        %v878 = vmul.f32 %v824, %v824
        %v879 = vmul.f32 %v825, %v825
        %v880 = vmul.f32 %v826, %v826
        %v881 = vsub.f32 %v845, %v863
        %v882 = vsub.f32 %v846, %v864
        %v883 = vsub.f32 %v847, %v865
        %v884 = vsub.f32 %v848, %v866
        %v885 = vsub.f32 %v849, %v867
        %v886 = vsub.f32 %v850, %v868
        %v887 = vsub.f32 %v851, %v869
        %v888 = vsub.f32 %v852, %v870
        %v889 = vsub.f32 %v853, %v871
        %v890 = vsub.f32 %v854, %v872
        %v891 = vsub.f32 %v855, %v873
        %v892 = vsub.f32 %v856, %v874
        %v893 = vsub.f32 %v857, %v875
        %v894 = vsub.f32 %v858, %v876
        %v895 = vsub.f32 %v859, %v877
        %v896 = vsub.f32 %v860, %v878
        %v897 = vsub.f32 %v861, %v879
        %v898 = vsub.f32 %v862, %v880
        %v899 = vadd.f32 %v881, 1e-05
        %v900 = vadd.f32 %v882, 1e-05
        %v901 = vadd.f32 %v883, 1e-05
        %v902 = vadd.f32 %v884, 1e-05
        %v903 = vadd.f32 %v885, 1e-05
        %v904 = vadd.f32 %v886, 1e-05
        %v905 = vadd.f32 %v887, 1e-05
        %v906 = vadd.f32 %v888, 1e-05
        %v907 = vadd.f32 %v889, 1e-05
        %v908 = vadd.f32 %v890, 1e-05
        %v909 = vadd.f32 %v891, 1e-05
        %v910 = vadd.f32 %v892, 1e-05
        %v911 = vadd.f32 %v893, 1e-05
        %v912 = vadd.f32 %v894, 1e-05
        %v913 = vadd.f32 %v895, 1e-05
        %v914 = vadd.f32 %v896, 1e-05
        %v915 = vadd.f32 %v897, 1e-05
        %v916 = vadd.f32 %v898, 1e-05
        %v917 = vrsqrt.pop %v899
        %v918 = vrsqrt.pop %v900
        %v919 = vrsqrt.pop %v901
        %v920 = vrsqrt.pop %v902
        %v921 = vrsqrt.pop %v903
        %v922 = vrsqrt.pop %v904
        %v923 = vrsqrt.pop %v905
        %v924 = vrsqrt.pop %v906
        %v925 = vrsqrt.pop %v907
        %v926 = vrsqrt.pop %v908
        %v927 = vrsqrt.pop %v909
        %v928 = vrsqrt.pop %v910
        %v929 = vrsqrt.pop %v911
        %v930 = vrsqrt.pop %v912
        %v931 = vrsqrt.pop %v913
        %v932 = vrsqrt.pop %v914
        %v933 = vrsqrt.pop %v915
        %v934 = vrsqrt.pop %v916
        %v935 = vld [vmem:[%s2] sm:$0xff]
        %v936 = vld [vmem:[%s2 + $0x8] sm:$0xff]
        %v937 = vld [vmem:[%s2 + $0x10] sm:$0xff]
        %v938 = vld [vmem:[%s2 + $0x18] sm:$0xff]
        %v939 = vld [vmem:[%s2 + $0x20] sm:$0xff]
        %v940 = vld [vmem:[%s2 + $0x28] sm:$0xff]
        %v941 = vld [vmem:[%s2 + $0x30] sm:$0xff]
        %v942 = vld [vmem:[%s2 + $0x38] sm:$0xff]
        %v943 = vld [vmem:[%s2 + $0x40] sm:$0xff]
        %v944 = vld [vmem:[%s2 + $0x48] sm:$0xff]
        %v945 = vld [vmem:[%s2 + $0x50] sm:$0xff]
        %v946 = vld [vmem:[%s2 + $0x58] sm:$0xff]
        %v947 = vld [vmem:[%s2 + $0x60] sm:$0xff]
        %v948 = vld [vmem:[%s2 + $0x68] sm:$0xff]
        %v949 = vld [vmem:[%s2 + $0x70] sm:$0xff]
        %v950 = vld [vmem:[%s2 + $0x78] sm:$0xff]
        %v951 = vld [vmem:[%s2 + $0x80] sm:$0xff]
        %v952 = vld [vmem:[%s2 + $0x88] sm:$0xff]
        %v953 = vmul.f32 %v935, %v917
        %v954 = vmul.f32 %v936, %v918
        %v955 = vmul.f32 %v937, %v919
        %v956 = vmul.f32 %v938, %v920
        %v957 = vmul.f32 %v939, %v921
        %v958 = vmul.f32 %v940, %v922
        %v959 = vmul.f32 %v941, %v923
        %v960 = vmul.f32 %v942, %v924
        %v961 = vmul.f32 %v943, %v925
        %v962 = vmul.f32 %v944, %v926
        %v963 = vmul.f32 %v945, %v927
        %v964 = vmul.f32 %v946, %v928
        %v965 = vmul.f32 %v947, %v929
        %v966 = vmul.f32 %v948, %v930
        %v967 = vmul.f32 %v949, %v931
        %v968 = vmul.f32 %v950, %v932
        %v969 = vmul.f32 %v951, %v933
        %v970 = vmul.f32 %v952, %v934
        %vm971 = vcmask 7168
        %972 = vst.msk [vmem:[#allocation4] sm:$0xff] %vm971, %v953
        %973 = vst.msk [vmem:[#allocation4 + $0x8] sm:$0xff] %vm971, %v954
        %974 = vst.msk [vmem:[#allocation4 + $0x10] sm:$0xff] %vm971, %v955
        %975 = vst.msk [vmem:[#allocation4 + $0x18] sm:$0xff] %vm971, %v956
        %976 = vst.msk [vmem:[#allocation4 + $0x20] sm:$0xff] %vm971, %v957
        %977 = vst.msk [vmem:[#allocation4 + $0x28] sm:$0xff] %vm971, %v958
        %978 = vst.msk [vmem:[#allocation4 + $0x30] sm:$0xff] %vm971, %v959
        %979 = vst.msk [vmem:[#allocation4 + $0x38] sm:$0xff] %vm971, %v960
        %980 = vst.msk [vmem:[#allocation4 + $0x40] sm:$0xff] %vm971, %v961
        %981 = vst.msk [vmem:[#allocation4 + $0x48] sm:$0xff] %vm971, %v962
        %982 = vst.msk [vmem:[#allocation4 + $0x50] sm:$0xff] %vm971, %v963
        %983 = vst.msk [vmem:[#allocation4 + $0x58] sm:$0xff] %vm971, %v964
        %984 = vst.msk [vmem:[#allocation4 + $0x60] sm:$0xff] %vm971, %v965
        %985 = vst.msk [vmem:[#allocation4 + $0x68] sm:$0xff] %vm971, %v966
        %986 = vst.msk [vmem:[#allocation4 + $0x70] sm:$0xff] %vm971, %v967
        %987 = vst.msk [vmem:[#allocation4 + $0x78] sm:$0xff] %vm971, %v968
        %988 = vst.msk [vmem:[#allocation4 + $0x80] sm:$0xff] %vm971, %v969
        %989 = vst.msk [vmem:[#allocation4 + $0x88] sm:$0xff] %vm971, %v970
        %v990 = vld [vmem:[%s3] sm:$0xff]
        %v991 = vld [vmem:[%s3 + $0x8] sm:$0xff]
        %v992 = vld [vmem:[%s3 + $0x10] sm:$0xff]
        %v993 = vld [vmem:[%s3 + $0x18] sm:$0xff]
        %v994 = vld [vmem:[%s3 + $0x20] sm:$0xff]
        %v995 = vld [vmem:[%s3 + $0x28] sm:$0xff]
        %v996 = vld [vmem:[%s3 + $0x30] sm:$0xff]
        %v997 = vld [vmem:[%s3 + $0x38] sm:$0xff]
        %v998 = vld [vmem:[%s3 + $0x40] sm:$0xff]
        %v999 = vld [vmem:[%s3 + $0x48] sm:$0xff]
        %v1000 = vld [vmem:[%s3 + $0x50] sm:$0xff]
        %v1001 = vld [vmem:[%s3 + $0x58] sm:$0xff]
        %v1002 = vld [vmem:[%s3 + $0x60] sm:$0xff]
        %v1003 = vld [vmem:[%s3 + $0x68] sm:$0xff]
        %v1004 = vld [vmem:[%s3 + $0x70] sm:$0xff]
        %v1005 = vld [vmem:[%s3 + $0x78] sm:$0xff]
        %v1006 = vld [vmem:[%s3 + $0x80] sm:$0xff]
        %v1007 = vld [vmem:[%s3 + $0x88] sm:$0xff]
        %v1008 = vmul.f32 %v809, %v953
        %v1009 = vmul.f32 %v810, %v954
        %v1010 = vmul.f32 %v811, %v955
        %v1011 = vmul.f32 %v812, %v956
        %v1012 = vmul.f32 %v813, %v957
        %v1013 = vmul.f32 %v814, %v958
        %v1014 = vmul.f32 %v815, %v959
        %v1015 = vmul.f32 %v816, %v960
        %v1016 = vmul.f32 %v817, %v961
        %v1017 = vmul.f32 %v818, %v962
        %v1018 = vmul.f32 %v819, %v963
        %v1019 = vmul.f32 %v820, %v964
        %v1020 = vmul.f32 %v821, %v965
        %v1021 = vmul.f32 %v822, %v966
        %v1022 = vmul.f32 %v823, %v967
        %v1023 = vmul.f32 %v824, %v968
        %v1024 = vmul.f32 %v825, %v969
        %v1025 = vmul.f32 %v826, %v970
        %v1026 = vsub.f32 %v990, %v1008
        %v1027 = vsub.f32 %v991, %v1009
        %v1028 = vsub.f32 %v992, %v1010
        %v1029 = vsub.f32 %v993, %v1011
        %v1030 = vsub.f32 %v994, %v1012
        %v1031 = vsub.f32 %v995, %v1013
        %v1032 = vsub.f32 %v996, %v1014
        %v1033 = vsub.f32 %v997, %v1015
        %v1034 = vsub.f32 %v998, %v1016
        %v1035 = vsub.f32 %v999, %v1017
        %v1036 = vsub.f32 %v1000, %v1018
        %v1037 = vsub.f32 %v1001, %v1019
        %v1038 = vsub.f32 %v1002, %v1020
        %v1039 = vsub.f32 %v1003, %v1021
        %v1040 = vsub.f32 %v1004, %v1022
        %v1041 = vsub.f32 %v1005, %v1023
        %v1042 = vsub.f32 %v1006, %v1024
        %v1043 = vsub.f32 %v1007, %v1025
        %1044 = vst.msk [vmem:[#allocation5] sm:$0xff] %vm971, %v1026
        %1045 = vst.msk [vmem:[#allocation5 + $0x8] sm:$0xff] %vm971, %v1027
        %1046 = vst.msk [vmem:[#allocation5 + $0x10] sm:$0xff] %vm971, %v1028
        %1047 = vst.msk [vmem:[#allocation5 + $0x18] sm:$0xff] %vm971, %v1029
        %1048 = vst.msk [vmem:[#allocation5 + $0x20] sm:$0xff] %vm971, %v1030
        %1049 = vst.msk [vmem:[#allocation5 + $0x28] sm:$0xff] %vm971, %v1031
        %1050 = vst.msk [vmem:[#allocation5 + $0x30] sm:$0xff] %vm971, %v1032
        %1051 = vst.msk [vmem:[#allocation5 + $0x38] sm:$0xff] %vm971, %v1033
        %1052 = vst.msk [vmem:[#allocation5 + $0x40] sm:$0xff] %vm971, %v1034
        %1053 = vst.msk [vmem:[#allocation5 + $0x48] sm:$0xff] %vm971, %v1035
        %1054 = vst.msk [vmem:[#allocation5 + $0x50] sm:$0xff] %vm971, %v1036
        %1055 = vst.msk [vmem:[#allocation5 + $0x58] sm:$0xff] %vm971, %v1037
        %1056 = vst.msk [vmem:[#allocation5 + $0x60] sm:$0xff] %vm971, %v1038
        %1057 = vst.msk [vmem:[#allocation5 + $0x68] sm:$0xff] %vm971, %v1039
        %1058 = vst.msk [vmem:[#allocation5 + $0x70] sm:$0xff] %vm971, %v1040
        %1059 = vst.msk [vmem:[#allocation5 + $0x78] sm:$0xff] %vm971, %v1041
        %1060 = vst.msk [vmem:[#allocation5 + $0x80] sm:$0xff] %vm971, %v1042
        %1061 = vst.msk [vmem:[#allocation5 + $0x88] sm:$0xff] %vm971, %v1043
      $region52: #{tpu_custom_call.1} parent=39 // pred_fallthru
        _
      %p1062 = scmp.eq.s32.totalorder %s20, 1
      // Predicated region
      $region53: #{tpu_custom_call.1} parent=39 // pred_check
        %p1063 = pneg %p1062
      $region54: #{tpu_custom_call.1} parent=39 // pred_check_branch
        %1065 = sbr.rel (%p1063) target = $region56
      $region55: #{tpu_custom_call.1} parent=39 // pred_region
        %v1066 = vld [vmem:[%s1] sm:$0xff]
        %v1067 = vld [vmem:[%s1 + $0x8] sm:$0xff]
        %v1068 = vld [vmem:[%s1 + $0x10] sm:$0xff]
        %v1069 = vld [vmem:[%s1 + $0x18] sm:$0xff]
        %v1070 = vld [vmem:[%s1 + $0x20] sm:$0xff]
        %v1071 = vld [vmem:[%s1 + $0x28] sm:$0xff]
        %v1072 = vld [vmem:[%s1 + $0x30] sm:$0xff]
        %v1073 = vld [vmem:[%s1 + $0x38] sm:$0xff]
        %v1074 = vld [vmem:[%s1 + $0x40] sm:$0xff]
        %v1075 = vld [vmem:[%s1 + $0x48] sm:$0xff]
        %v1076 = vld [vmem:[%s1 + $0x50] sm:$0xff]
        %v1077 = vld [vmem:[%s1 + $0x58] sm:$0xff]
        %v1078 = vld [vmem:[%s1 + $0x60] sm:$0xff]
        %v1079 = vld [vmem:[%s1 + $0x68] sm:$0xff]
        %v1080 = vld [vmem:[%s1 + $0x70] sm:$0xff]
        %v1081 = vld [vmem:[%s1 + $0x78] sm:$0xff]
        %v1082 = vld [vmem:[%s1 + $0x80] sm:$0xff]
        %v1083 = vld [vmem:[%s1 + $0x88] sm:$0xff]
        %v1084 = vld [vmem:[%s254] sm:$0xff]
        %v1085 = vld [vmem:[%s254 + $0x8] sm:$0xff]
        %v1086 = vld [vmem:[%s254 + $0x10] sm:$0xff]
        %v1087 = vld [vmem:[%s254 + $0x18] sm:$0xff]
        %v1088 = vld [vmem:[%s254 + $0x20] sm:$0xff]
        %v1089 = vld [vmem:[%s254 + $0x28] sm:$0xff]
        %v1090 = vld [vmem:[%s254 + $0x30] sm:$0xff]
        %v1091 = vld [vmem:[%s254 + $0x38] sm:$0xff]
        %vm1092 = vcmask 523264
        %v1094 = vsel %vm1092, %v1066, 0
        %v1097 = vsel %vm1092, %v1067, 0
        %v1100 = vsel %vm1092, %v1068, 0
        %v1103 = vsel %vm1092, %v1069, 0
        %v1106 = vsel %vm1092, %v1070, 0
        %v1109 = vsel %vm1092, %v1071, 0
        %v1112 = vsel %vm1092, %v1072, 0
        %v1115 = vsel %vm1092, %v1073, 0
        %v1118 = vsel %vm1092, %v1074, 0
        %v1121 = vsel %vm1092, %v1075, 0
        %v1124 = vsel %vm1092, %v1076, 0
        %v1127 = vsel %vm1092, %v1077, 0
        %v1130 = vsel %vm1092, %v1078, 0
        %v1133 = vsel %vm1092, %v1079, 0
        %v1136 = vsel %vm1092, %v1080, 0
        %v1139 = vsel %vm1092, %v1081, 0
        %v1142 = vsel %vm1092, %v1082, 0
        %v1145 = vsel %vm1092, %v1083, 0
        %1147 = vmatprep.subr.mxu0 0.0
        %1148 = vmatpush1.msra.mxu0 0.0
        %1149 = vmatprep.subr.mxu0 0.0
        %1150 = vmatpush1.msra.mxu0 0.0
        %1151 = vmatprep.subr.mxu0 0.0
        %1152 = vmatpush1.msra.mxu0 0.0
        %1153 = vmatprep.subr.mxu0 0.0
        %1154 = vmatpush1.msra.mxu0 0.0
        %1155 = vmatprep.subr.mxu0 0.0
        %1156 = vmatpush1.msra.mxu0 0.0
        %1157 = vmatprep.subr.mxu0 0.0
        %1158 = vmatpush1.msra.mxu0 0.0
        %1159 = vmatprep.subr.mxu0 0.0
        %1160 = vmatpush1.msra.mxu0 0.0
        %1161 = vmatprep.subr.mxu0 0.0
        %1162 = vmatpush1.msra.mxu0 0.0
        %1163 = vmatprep.subr.mxu0 0.0
        %1164 = vmatpush1.msra.mxu0 %v1091
        %1165 = vmatprep.subr.mxu0 0.0
        %1166 = vmatpush1.msra.mxu0 %v1090
        %1167 = vmatprep.subr.mxu0 0.0
        %1168 = vmatpush1.msra.mxu0 %v1089
        %1169 = vmatprep.subr.mxu0 0.0
        %1170 = vmatpush1.msra.mxu0 %v1088
        %1171 = vmatprep.subr.mxu0 0.0
        %1172 = vmatpush1.msra.mxu0 %v1087
        %1173 = vmatprep.subr.mxu0 0.0
        %1174 = vmatpush1.msra.mxu0 %v1086
        %1175 = vmatprep.subr.mxu0 0.0
        %1176 = vmatpush1.msra.mxu0 %v1085
        %1177 = vmatprep.subr.mxu0 0.0
        %1178 = vmatpush1.msra.mxu0 %v1084
        %1179 = vmatprep.subr.mxu0 0.0
        %1180 = vmatpush2.msra.mxu0 0.0
        %1181 = vmatprep.subr.mxu0 0.0
        %1182 = vmatpush2.msra.mxu0 0.0
        %1183 = vmatprep.subr.mxu0 0.0
        %1184 = vmatpush2.msra.mxu0 0.0
        %1185 = vmatprep.subr.mxu0 0.0
        %1186 = vmatpush2.msra.mxu0 0.0
        %1187 = vmatprep.subr.mxu0 0.0
        %1188 = vmatpush2.msra.mxu0 0.0
        %1189 = vmatprep.subr.mxu0 0.0
        %1190 = vmatpush2.msra.mxu0 0.0
        %1191 = vmatprep.subr.mxu0 0.0
        %1192 = vmatpush2.msra.mxu0 0.0
        %1193 = vmatprep.subr.mxu0 0.0
        %1194 = vmatpush2.msra.mxu0 0.0
        %1195 = vmatprep.subr.mxu0 0.0
        %1196 = vmatpush2.msra.mxu0 0.0
        %1197 = vmatprep.subr.mxu0 0.0
        %1198 = vmatpush2.msra.mxu0 0.0
        %1199 = vmatprep.subr.mxu0 0.0
        %1200 = vmatpush2.msra.mxu0 0.0
        %1201 = vmatprep.subr.mxu0 0.0
        %1202 = vmatpush2.msra.mxu0 0.0
        %1203 = vmatprep.subr.mxu0 0.0
        %1204 = vmatpush2.msra.mxu0 0.0
        %1205 = vmatprep.subr.mxu0 0.0
        %1206 = vmatpush2.msra.mxu0 0.0
        %1207 = vmatprep.subr.mxu0 0.0
        %1208 = vmatpush2.msra.mxu0 0.0
        %1209 = vmatprep.subr.mxu0 0.0
        %1210 = vmatpush2.msra.mxu0 0.0
        %1211 = vmatprep.mubr.f32.mxu0 0.0
        %1212 = vmatmul.mubr.f32.gmra.mxu0 %v1094
        %v1213 = vpop.f32.mrf.mxu0
        %v1214 = vadd.f32 0.0, %v1213
        %v1215 = vpop.f32.mrf.mxu0
        %1216 = vmatprep.mubr.f32.mxu0 0.0
        %1217 = vmatmul.mubr.f32.gmra.mxu0 %v1097
        %v1218 = vpop.f32.mrf.mxu0
        %v1219 = vadd.f32 0.0, %v1218
        %v1220 = vpop.f32.mrf.mxu0
        %1221 = vmatprep.mubr.f32.mxu0 0.0
        %1222 = vmatmul.mubr.f32.gmra.mxu0 %v1100
        %v1223 = vpop.f32.mrf.mxu0
        %v1224 = vadd.f32 0.0, %v1223
        %v1225 = vpop.f32.mrf.mxu0
        %1226 = vmatprep.mubr.f32.mxu0 0.0
        %1227 = vmatmul.mubr.f32.gmra.mxu0 %v1103
        %v1228 = vpop.f32.mrf.mxu0
        %v1229 = vadd.f32 0.0, %v1228
        %v1230 = vpop.f32.mrf.mxu0
        %1231 = vmatprep.mubr.f32.mxu0 0.0
        %1232 = vmatmul.mubr.f32.gmra.mxu0 %v1106
        %v1233 = vpop.f32.mrf.mxu0
        %v1234 = vadd.f32 0.0, %v1233
        %v1235 = vpop.f32.mrf.mxu0
        %1236 = vmatprep.mubr.f32.mxu0 0.0
        %1237 = vmatmul.mubr.f32.gmra.mxu0 %v1109
        %v1238 = vpop.f32.mrf.mxu0
        %v1239 = vadd.f32 0.0, %v1238
        %v1240 = vpop.f32.mrf.mxu0
        %1241 = vmatprep.mubr.f32.mxu0 0.0
        %1242 = vmatmul.mubr.f32.gmra.mxu0 %v1112
        %v1243 = vpop.f32.mrf.mxu0
        %v1244 = vadd.f32 0.0, %v1243
        %v1245 = vpop.f32.mrf.mxu0
        %1246 = vmatprep.mubr.f32.mxu0 0.0
        %1247 = vmatmul.mubr.f32.gmra.mxu0 %v1115
        %v1248 = vpop.f32.mrf.mxu0
        %v1249 = vadd.f32 0.0, %v1248
        %v1250 = vpop.f32.mrf.mxu0
        %1251 = vmatprep.mubr.f32.mxu0 0.0
        %1252 = vmatmul.mubr.f32.gmra.mxu0 %v1118
        %v1253 = vpop.f32.mrf.mxu0
        %v1254 = vadd.f32 0.0, %v1253
        %v1255 = vpop.f32.mrf.mxu0
        %1256 = vmatprep.mubr.f32.mxu0 0.0
        %1257 = vmatmul.mubr.f32.gmra.mxu0 %v1121
        %v1258 = vpop.f32.mrf.mxu0
        %v1259 = vadd.f32 0.0, %v1258
        %v1260 = vpop.f32.mrf.mxu0
        %1261 = vmatprep.mubr.f32.mxu0 0.0
        %1262 = vmatmul.mubr.f32.gmra.mxu0 %v1124
        %v1263 = vpop.f32.mrf.mxu0
        %v1264 = vadd.f32 0.0, %v1263
        %v1265 = vpop.f32.mrf.mxu0
        %1266 = vmatprep.mubr.f32.mxu0 0.0
        %1267 = vmatmul.mubr.f32.gmra.mxu0 %v1127
        %v1268 = vpop.f32.mrf.mxu0
        %v1269 = vadd.f32 0.0, %v1268
        %v1270 = vpop.f32.mrf.mxu0
        %1271 = vmatprep.mubr.f32.mxu0 0.0
        %1272 = vmatmul.mubr.f32.gmra.mxu0 %v1130
        %v1273 = vpop.f32.mrf.mxu0
        %v1274 = vadd.f32 0.0, %v1273
        %v1275 = vpop.f32.mrf.mxu0
        %1276 = vmatprep.mubr.f32.mxu0 0.0
        %1277 = vmatmul.mubr.f32.gmra.mxu0 %v1133
        %v1278 = vpop.f32.mrf.mxu0
        %v1279 = vadd.f32 0.0, %v1278
        %v1280 = vpop.f32.mrf.mxu0
        %1281 = vmatprep.mubr.f32.mxu0 0.0
        %1282 = vmatmul.mubr.f32.gmra.mxu0 %v1136
        %v1283 = vpop.f32.mrf.mxu0
        %v1284 = vadd.f32 0.0, %v1283
        %v1285 = vpop.f32.mrf.mxu0
        %1286 = vmatprep.mubr.f32.mxu0 0.0
        %1287 = vmatmul.mubr.f32.gmra.mxu0 %v1139
        %v1288 = vpop.f32.mrf.mxu0
        %v1289 = vadd.f32 0.0, %v1288
        %v1290 = vpop.f32.mrf.mxu0
        %1291 = vmatprep.mubr.f32.mxu0 0.0
        %1292 = vmatmul.mubr.f32.gmra.mxu0 %v1142
        %v1293 = vpop.f32.mrf.mxu0
        %v1294 = vadd.f32 0.0, %v1293
        %v1295 = vpop.f32.mrf.mxu0
        %1296 = vmatprep.mubr.f32.mxu0 0.0
        %1297 = vmatmul.mubr.f32.gmra.mxu0 %v1145
        %v1298 = vpop.f32.mrf.mxu0
        %v1299 = vadd.f32 0.0, %v1298
        %v1300 = vpop.f32.mrf.mxu0
        %1301 = vdwg.mxu0
        %v1302 = vld [vmem:[#allocation4] sm:$0xff]
        %v1303 = vld [vmem:[#allocation4 + $0x8] sm:$0xff]
        %v1304 = vld [vmem:[#allocation4 + $0x10] sm:$0xff]
        %v1305 = vld [vmem:[#allocation4 + $0x18] sm:$0xff]
        %v1306 = vld [vmem:[#allocation4 + $0x20] sm:$0xff]
        %v1307 = vld [vmem:[#allocation4 + $0x28] sm:$0xff]
        %v1308 = vld [vmem:[#allocation4 + $0x30] sm:$0xff]
        %v1309 = vld [vmem:[#allocation4 + $0x38] sm:$0xff]
        %v1310 = vld [vmem:[#allocation4 + $0x40] sm:$0xff]
        %v1311 = vld [vmem:[#allocation4 + $0x48] sm:$0xff]
        %v1312 = vld [vmem:[#allocation4 + $0x50] sm:$0xff]
        %v1313 = vld [vmem:[#allocation4 + $0x58] sm:$0xff]
        %v1314 = vld [vmem:[#allocation4 + $0x60] sm:$0xff]
        %v1315 = vld [vmem:[#allocation4 + $0x68] sm:$0xff]
        %v1316 = vld [vmem:[#allocation4 + $0x70] sm:$0xff]
        %v1317 = vld [vmem:[#allocation4 + $0x78] sm:$0xff]
        %v1318 = vld [vmem:[#allocation4 + $0x80] sm:$0xff]
        %v1319 = vld [vmem:[#allocation4 + $0x88] sm:$0xff]
        %1321 = vset.pattern.permute.xlu0 0
        %1322 = vperm.xlu0 %1321, %v1302
        %v1323 = vpop.permute.xlu0 %1322
        %1326 = vset.pattern.permute.xlu0 0
        %1327 = vperm.xlu0 %1326, %v1303
        %v1328 = vpop.permute.xlu0 %1327
        %1331 = vset.pattern.permute.xlu0 0
        %1332 = vperm.xlu0 %1331, %v1304
        %v1333 = vpop.permute.xlu0 %1332
        %1336 = vset.pattern.permute.xlu0 0
        %1337 = vperm.xlu0 %1336, %v1305
        %v1338 = vpop.permute.xlu0 %1337
        %1341 = vset.pattern.permute.xlu0 0
        %1342 = vperm.xlu0 %1341, %v1306
        %v1343 = vpop.permute.xlu0 %1342
        %1346 = vset.pattern.permute.xlu0 0
        %1347 = vperm.xlu0 %1346, %v1307
        %v1348 = vpop.permute.xlu0 %1347
        %1351 = vset.pattern.permute.xlu0 0
        %1352 = vperm.xlu0 %1351, %v1308
        %v1353 = vpop.permute.xlu0 %1352
        %1356 = vset.pattern.permute.xlu0 0
        %1357 = vperm.xlu0 %1356, %v1309
        %v1358 = vpop.permute.xlu0 %1357
        %1361 = vset.pattern.permute.xlu0 0
        %1362 = vperm.xlu0 %1361, %v1310
        %v1363 = vpop.permute.xlu0 %1362
        %1366 = vset.pattern.permute.xlu0 0
        %1367 = vperm.xlu0 %1366, %v1311
        %v1368 = vpop.permute.xlu0 %1367
        %1371 = vset.pattern.permute.xlu0 0
        %1372 = vperm.xlu0 %1371, %v1312
        %v1373 = vpop.permute.xlu0 %1372
        %1376 = vset.pattern.permute.xlu0 0
        %1377 = vperm.xlu0 %1376, %v1313
        %v1378 = vpop.permute.xlu0 %1377
        %1381 = vset.pattern.permute.xlu0 0
        %1382 = vperm.xlu0 %1381, %v1314
        %v1383 = vpop.permute.xlu0 %1382
        %1386 = vset.pattern.permute.xlu0 0
        %1387 = vperm.xlu0 %1386, %v1315
        %v1388 = vpop.permute.xlu0 %1387
        %1391 = vset.pattern.permute.xlu0 0
        %1392 = vperm.xlu0 %1391, %v1316
        %v1393 = vpop.permute.xlu0 %1392
        %1396 = vset.pattern.permute.xlu0 0
        %1397 = vperm.xlu0 %1396, %v1317
        %v1398 = vpop.permute.xlu0 %1397
        %1401 = vset.pattern.permute.xlu0 0
        %1402 = vperm.xlu0 %1401, %v1318
        %v1403 = vpop.permute.xlu0 %1402
        %1406 = vset.pattern.permute.xlu0 0
        %1407 = vperm.xlu0 %1406, %v1319
        %v1408 = vpop.permute.xlu0 %1407
        %v1410 = vmul.f32 %v1214, %v1323
        %v1411 = vmul.f32 %v1219, %v1328
        %v1412 = vmul.f32 %v1224, %v1333
        %v1413 = vmul.f32 %v1229, %v1338
        %v1414 = vmul.f32 %v1234, %v1343
        %v1415 = vmul.f32 %v1239, %v1348
        %v1416 = vmul.f32 %v1244, %v1353
        %v1417 = vmul.f32 %v1249, %v1358
        %v1418 = vmul.f32 %v1254, %v1363
        %v1419 = vmul.f32 %v1259, %v1368
        %v1420 = vmul.f32 %v1264, %v1373
        %v1421 = vmul.f32 %v1269, %v1378
        %v1422 = vmul.f32 %v1274, %v1383
        %v1423 = vmul.f32 %v1279, %v1388
        %v1424 = vmul.f32 %v1284, %v1393
        %v1425 = vmul.f32 %v1289, %v1398
        %v1426 = vmul.f32 %v1294, %v1403
        %v1427 = vmul.f32 %v1299, %v1408
        %v1428 = vld [vmem:[#allocation5] sm:$0xff]
        %v1429 = vld [vmem:[#allocation5 + $0x8] sm:$0xff]
        %v1430 = vld [vmem:[#allocation5 + $0x10] sm:$0xff]
        %v1431 = vld [vmem:[#allocation5 + $0x18] sm:$0xff]
        %v1432 = vld [vmem:[#allocation5 + $0x20] sm:$0xff]
        %v1433 = vld [vmem:[#allocation5 + $0x28] sm:$0xff]
        %v1434 = vld [vmem:[#allocation5 + $0x30] sm:$0xff]
        %v1435 = vld [vmem:[#allocation5 + $0x38] sm:$0xff]
        %v1436 = vld [vmem:[#allocation5 + $0x40] sm:$0xff]
        %v1437 = vld [vmem:[#allocation5 + $0x48] sm:$0xff]
        %v1438 = vld [vmem:[#allocation5 + $0x50] sm:$0xff]
        %v1439 = vld [vmem:[#allocation5 + $0x58] sm:$0xff]
        %v1440 = vld [vmem:[#allocation5 + $0x60] sm:$0xff]
        %v1441 = vld [vmem:[#allocation5 + $0x68] sm:$0xff]
        %v1442 = vld [vmem:[#allocation5 + $0x70] sm:$0xff]
        %v1443 = vld [vmem:[#allocation5 + $0x78] sm:$0xff]
        %v1444 = vld [vmem:[#allocation5 + $0x80] sm:$0xff]
        %v1445 = vld [vmem:[#allocation5 + $0x88] sm:$0xff]
        %1447 = vset.pattern.permute.xlu0 0
        %1448 = vperm.xlu0 %1447, %v1428
        %v1449 = vpop.permute.xlu0 %1448
        %1452 = vset.pattern.permute.xlu0 0
        %1453 = vperm.xlu0 %1452, %v1429
        %v1454 = vpop.permute.xlu0 %1453
        %1457 = vset.pattern.permute.xlu0 0
        %1458 = vperm.xlu0 %1457, %v1430
        %v1459 = vpop.permute.xlu0 %1458
        %1462 = vset.pattern.permute.xlu0 0
        %1463 = vperm.xlu0 %1462, %v1431
        %v1464 = vpop.permute.xlu0 %1463
        %1467 = vset.pattern.permute.xlu0 0
        %1468 = vperm.xlu0 %1467, %v1432
        %v1469 = vpop.permute.xlu0 %1468
        %1472 = vset.pattern.permute.xlu0 0
        %1473 = vperm.xlu0 %1472, %v1433
        %v1474 = vpop.permute.xlu0 %1473
        %1477 = vset.pattern.permute.xlu0 0
        %1478 = vperm.xlu0 %1477, %v1434
        %v1479 = vpop.permute.xlu0 %1478
        %1482 = vset.pattern.permute.xlu0 0
        %1483 = vperm.xlu0 %1482, %v1435
        %v1484 = vpop.permute.xlu0 %1483
        %1487 = vset.pattern.permute.xlu0 0
        %1488 = vperm.xlu0 %1487, %v1436
        %v1489 = vpop.permute.xlu0 %1488
        %1492 = vset.pattern.permute.xlu0 0
        %1493 = vperm.xlu0 %1492, %v1437
        %v1494 = vpop.permute.xlu0 %1493
        %1497 = vset.pattern.permute.xlu0 0
        %1498 = vperm.xlu0 %1497, %v1438
        %v1499 = vpop.permute.xlu0 %1498
        %1502 = vset.pattern.permute.xlu0 0
        %1503 = vperm.xlu0 %1502, %v1439
        %v1504 = vpop.permute.xlu0 %1503
        %1507 = vset.pattern.permute.xlu0 0
        %1508 = vperm.xlu0 %1507, %v1440
        %v1509 = vpop.permute.xlu0 %1508
        %1512 = vset.pattern.permute.xlu0 0
        %1513 = vperm.xlu0 %1512, %v1441
        %v1514 = vpop.permute.xlu0 %1513
        %1517 = vset.pattern.permute.xlu0 0
        %1518 = vperm.xlu0 %1517, %v1442
        %v1519 = vpop.permute.xlu0 %1518
        %1522 = vset.pattern.permute.xlu0 0
        %1523 = vperm.xlu0 %1522, %v1443
        %v1524 = vpop.permute.xlu0 %1523
        %1527 = vset.pattern.permute.xlu0 0
        %1528 = vperm.xlu0 %1527, %v1444
        %v1529 = vpop.permute.xlu0 %1528
        %1532 = vset.pattern.permute.xlu0 0
        %1533 = vperm.xlu0 %1532, %v1445
        %v1534 = vpop.permute.xlu0 %1533
        %v1536 = vadd.f32 %v1410, %v1449
        %v1537 = vadd.f32 %v1411, %v1454
        %v1538 = vadd.f32 %v1412, %v1459
        %v1539 = vadd.f32 %v1413, %v1464
        %v1540 = vadd.f32 %v1414, %v1469
        %v1541 = vadd.f32 %v1415, %v1474
        %v1542 = vadd.f32 %v1416, %v1479
        %v1543 = vadd.f32 %v1417, %v1484
        %v1544 = vadd.f32 %v1418, %v1489
        %v1545 = vadd.f32 %v1419, %v1494
        %v1546 = vadd.f32 %v1420, %v1499
        %v1547 = vadd.f32 %v1421, %v1504
        %v1548 = vadd.f32 %v1422, %v1509
        %v1549 = vadd.f32 %v1423, %v1514
        %v1550 = vadd.f32 %v1424, %v1519
        %v1551 = vadd.f32 %v1425, %v1524
        %v1552 = vadd.f32 %v1426, %v1529
        %v1553 = vadd.f32 %v1427, %v1534
        %v1554 = vld [vmem:[%s260] sm:$0xff]
        %v1555 = vld [vmem:[%s260 + $0x8] sm:$0xff]
        %v1556 = vld [vmem:[%s260 + $0x10] sm:$0xff]
        %v1557 = vld [vmem:[%s260 + $0x18] sm:$0xff]
        %v1558 = vld [vmem:[%s260 + $0x20] sm:$0xff]
        %v1559 = vld [vmem:[%s260 + $0x28] sm:$0xff]
        %v1560 = vld [vmem:[%s260 + $0x30] sm:$0xff]
        %v1561 = vld [vmem:[%s260 + $0x38] sm:$0xff]
        %v1562 = vld [vmem:[%s260 + $0x40] sm:$0xff]
        %v1563 = vld [vmem:[%s260 + $0x48] sm:$0xff]
        %v1564 = vld [vmem:[%s260 + $0x50] sm:$0xff]
        %v1565 = vld [vmem:[%s260 + $0x58] sm:$0xff]
        %v1566 = vld [vmem:[%s260 + $0x60] sm:$0xff]
        %v1567 = vld [vmem:[%s260 + $0x68] sm:$0xff]
        %v1568 = vld [vmem:[%s260 + $0x70] sm:$0xff]
        %v1569 = vld [vmem:[%s260 + $0x78] sm:$0xff]
        %v1570 = vld [vmem:[%s260 + $0x80] sm:$0xff]
        %v1571 = vld [vmem:[%s260 + $0x88] sm:$0xff]
        %v1572 = vadd.f32 %v1536, %v1554
        %v1573 = vadd.f32 %v1537, %v1555
        %v1574 = vadd.f32 %v1538, %v1556
        %v1575 = vadd.f32 %v1539, %v1557
        %v1576 = vadd.f32 %v1540, %v1558
        %v1577 = vadd.f32 %v1541, %v1559
        %v1578 = vadd.f32 %v1542, %v1560
        %v1579 = vadd.f32 %v1543, %v1561
        %v1580 = vadd.f32 %v1544, %v1562
        %v1581 = vadd.f32 %v1545, %v1563
        %v1582 = vadd.f32 %v1546, %v1564
        %v1583 = vadd.f32 %v1547, %v1565
        %v1584 = vadd.f32 %v1548, %v1566
        %v1585 = vadd.f32 %v1549, %v1567
        %v1586 = vadd.f32 %v1550, %v1568
        %v1587 = vadd.f32 %v1551, %v1569
        %v1588 = vadd.f32 %v1552, %v1570
        %v1589 = vadd.f32 %v1553, %v1571
        %1590 = vst.msk [vmem:[%s267] sm:$0xff] %vm1092, %v1572
        %1591 = vst.msk [vmem:[%s267 + $0x8] sm:$0xff] %vm1092, %v1573
        %1592 = vst.msk [vmem:[%s267 + $0x10] sm:$0xff] %vm1092, %v1574
        %1593 = vst.msk [vmem:[%s267 + $0x18] sm:$0xff] %vm1092, %v1575
        %1594 = vst.msk [vmem:[%s267 + $0x20] sm:$0xff] %vm1092, %v1576
        %1595 = vst.msk [vmem:[%s267 + $0x28] sm:$0xff] %vm1092, %v1577
        %1596 = vst.msk [vmem:[%s267 + $0x30] sm:$0xff] %vm1092, %v1578
        %1597 = vst.msk [vmem:[%s267 + $0x38] sm:$0xff] %vm1092, %v1579
        %1598 = vst.msk [vmem:[%s267 + $0x40] sm:$0xff] %vm1092, %v1580
        %1599 = vst.msk [vmem:[%s267 + $0x48] sm:$0xff] %vm1092, %v1581
        %1600 = vst.msk [vmem:[%s267 + $0x50] sm:$0xff] %vm1092, %v1582
        %1601 = vst.msk [vmem:[%s267 + $0x58] sm:$0xff] %vm1092, %v1583
        %1602 = vst.msk [vmem:[%s267 + $0x60] sm:$0xff] %vm1092, %v1584
        %1603 = vst.msk [vmem:[%s267 + $0x68] sm:$0xff] %vm1092, %v1585
        %1604 = vst.msk [vmem:[%s267 + $0x70] sm:$0xff] %vm1092, %v1586
        %1605 = vst.msk [vmem:[%s267 + $0x78] sm:$0xff] %vm1092, %v1587
        %1606 = vst.msk [vmem:[%s267 + $0x80] sm:$0xff] %vm1092, %v1588
        %1607 = vst.msk [vmem:[%s267 + $0x88] sm:$0xff] %vm1092, %v1589
      $region56: #{tpu_custom_call.1} parent=39 // pred_fallthru
        _
      %s1608 = smul.u32 %s20, %s21
      %p1609 = scmp.lt.s32.totalorder %s1608, 1
      %s1610 = scalar_select %p1609, %s1608, 1
      %s1611 = smul.addr %s1610, 18
      %s1612 = smul.addr %s1611, 8
      %s1613 = scalar_lea.vmem %s5, %s1612
      // Predicated region
      $region57: #{tpu_custom_call.1} parent=39 // pred_check
        %p1614 = pneg %p165
      $region58: #{tpu_custom_call.1} parent=39 // pred_check_branch
        %1616 = sbr.rel (%p1614) target = $region60
      $region59: #{tpu_custom_call.1} parent=39 // pred_region
        %s1617 = smul.u32 %s20, %s21
      $region60: #{tpu_custom_call.1} parent=39 // pred_fallthru
        _
    $region40: #{tpu_custom_call.1} parent=5 // pred_fallthru
      _
    %p1618 = scmp.le.s32.totalorder 2, %s11
    // Predicated region
    $region61: #{tpu_custom_call.1} parent=5 // pred_check
      %p1619 = pneg %p1618
    $region62: #{tpu_custom_call.1} parent=5 // pred_check_branch
      %1621 = sbr.rel (%p1619) target = $region64
    $region63: #{tpu_custom_call.1} parent=5 // pred_region
      %s1622 = ssub.s32 %s11, 2
      // Predicated region
      $region65: #{tpu_custom_call.1} parent=63 // pred_check
        %p1623 = pneg %p171
      $region66: #{tpu_custom_call.1} parent=63 // pred_check_branch
        %1625 = sbr.rel (%p1623) target = $region68
      $region67: #{tpu_custom_call.1} parent=63 // pred_region
        %s1626 = smul.u32 %s22, %s23
        %p1627 = scmp.lt.s32.totalorder %s1626, 1
        %s1628 = scalar_select %p1627, %s1626, 1
        %s1629 = smul.addr %s1628, 18
        %s1630 = smul.addr %s1629, 8
        %s1631 = scalar_lea.vmem %s5, %s1630
      $region68: #{tpu_custom_call.1} parent=63 // pred_fallthru
        _
    $region64: #{tpu_custom_call.1} parent=5 // pred_fallthru
      _
  $region6: #{tpu_custom_call.1} parent=0 // loop_footer
    %s15 = sadd.s32 1, %s11
  $region7: #{tpu_custom_call.1} parent=0 // loop_footer_branch
    %10 = sbr.rel target = $region3
  $region8: #{tpu_custom_call.1} parent=0 // loop_exit
    _

</llo_original>
